<compile_context>
chip_gen: v6e
topology: v6e:2x2x1
jax: 0.10.0
libtpu: 0.0.40
codegen_flags: <defaults>
</compile_context>

<pallas_src>
import jax
import jax.numpy as jnp
import numpy as np
from jax.experimental import pallas as pl
from jax.experimental.pallas import tpu as pltpu

BN_EPS = 1e-5


# --------------------------------------------------------------------------
# Kernels (closures over the static spatial sizes H, W)
# --------------------------------------------------------------------------
def _make_kernels(H, W):
    HW = H * W

    def conv_tile(x_refs, w_ref):
        """Direct 3x3x3 conv of one output depth slice.

        x_refs: three (1, (H+2)*W, 3*Cin) bf16 blocks (input depth slices
                d, d+1, d+2 of the kw-unfolded padded input).
        w_ref:  (9, Cout, 3*Cin) bf16 (taps ordered kd*3+kh, lanes kw*Cin+ci).
        Returns (Cout, HW) f32.
        """
        cout = w_ref.shape[1]
        acc = jnp.zeros((cout, HW), jnp.float32)
        for kd, x_ref in enumerate(x_refs):
            xk = x_ref[0]                                   # ((H+2)*W, 3*Cin)
            for kh in range(3):
                # kh tap = static sublane slice; kw taps already in the lanes.
                slab = xk[kh * W: kh * W + HW, :]           # (HW, 3*Cin)
                acc = acc + jax.lax.dot_general(
                    w_ref[3 * kd + kh], slab,
                    dimension_numbers=(((1,), (1,)), ((), ())),
                    preferred_element_type=jnp.float32)      # (Cout, HW)
        return acc

    def stats_kernel(x0_ref, x1_ref, x2_ref, w_ref, stats_ref):
        yt = conv_tile((x0_ref, x1_ref, x2_ref), w_ref)      # (Cout, HW) f32
        s = jnp.sum(yt, axis=1, keepdims=True)               # (Cout, 1)
        sq = jnp.sum(yt * yt, axis=1, keepdims=True)         # (Cout, 1)
        stats_ref[0, 0, :, 0:1] = s
        stats_ref[0, 0, :, 1:2] = sq

    def bn_relu_kernel(x0_ref, x1_ref, x2_ref, w_ref, scale_ref, shift_ref,
                       out_ref):
        yt = conv_tile((x0_ref, x1_ref, x2_ref), w_ref)      # (Cout, HW) f32
        out_ref[0, 0, :, :] = jnp.maximum(
            yt * scale_ref[...] + shift_ref[...], 0.0)

    return stats_kernel, bn_relu_kernel


# --------------------------------------------------------------------------
# Forward pass
# --------------------------------------------------------------------------
@jax.jit
def conv3d_block_forward(x_ncdhw, w_oidhw, bias, gamma, beta):
    """x: (N, Cin, D, H, W) -> (N, Cout, D, H, W), float32."""
    # Conv bias cancels exactly in (y - mean) under training-mode BatchNorm.
    del bias

    N, Cin, D, H, W = x_ncdhw.shape
    Cout = w_oidhw.shape[0]
    Dp, Hp = D + 2, H + 2
    HW = H * W
    K = 27 * Cin
    M = N * D * H * W

    # ---- small XLA prep: NCDHW -> zero-padded NDHWC -> kw-unfolded bf16 ----
    # xprep[n*Dp + dp, hp*W + w, kw*Cin + ci] = xpad[n, dp, hp, w + kw, ci]
    x_ndhwc = jnp.transpose(x_ncdhw, (0, 2, 3, 4, 1))
    xpad = jnp.pad(x_ndhwc, ((0, 0), (1, 1), (1, 1), (1, 1), (0, 0)))
    xw = jnp.concatenate([xpad[:, :, :, kw:kw + W, :] for kw in range(3)],
                         axis=-1)                            # (N,Dp,Hp,W,3Cin)
    xprep = xw.reshape(N * Dp, Hp * W, 3 * Cin).astype(jnp.bfloat16)

    # weights (Cout, Cin, kd, kh, kw) -> (kd*3+kh, Cout, kw*Cin+ci), bf16
    w9 = jnp.transpose(w_oidhw, (2, 3, 0, 4, 1)).reshape(9, Cout, 3 * Cin)
    w9 = w9.astype(jnp.bfloat16)

    stats_kernel, bn_relu_kernel = _make_kernels(H, W)

    def x_spec(kd):
        # kd handled by three shifted reads of the same array.
        return pl.BlockSpec((1, Hp * W, 3 * Cin),
                            lambda n, d, kd=kd: (n * Dp + d + kd, 0, 0))

    w_spec = pl.BlockSpec((9, Cout, 3 * Cin), lambda n, d: (0, 0, 0))
    cparams = pltpu.CompilerParams(
        dimension_semantics=("parallel", "parallel"),
        vmem_limit_bytes=32 * 1024 * 1024,
    )
    in_bytes = 3 * N * D * Hp * W * 3 * Cin * 2 + 9 * Cout * 3 * Cin * 2

    # ---------------- pass 1: conv + per-tile BN statistics ----------------
    stats = pl.pallas_call(
        stats_kernel,
        grid=(N, D),
        in_specs=[x_spec(0), x_spec(1), x_spec(2), w_spec],
        out_specs=pl.BlockSpec((1, 1, Cout, 2), lambda n, d: (n, d, 0, 0)),
        out_shape=jax.ShapeDtypeStruct((N, D, Cout, 2), jnp.float32),
        compiler_params=cparams,
        cost_estimate=pl.CostEstimate(
            flops=2 * M * K * Cout, transcendentals=0,
            bytes_accessed=in_bytes + N * D * Cout * 2 * 4),
    )(xprep, xprep, xprep, w9)

    # ---------------- tiny stats finalize (XLA glue) ----------------
    totals = jnp.sum(stats, axis=(0, 1))                     # (Cout, 2)
    mean = totals[:, 0] / M
    var = jnp.maximum(totals[:, 1] / M - mean * mean, 0.0)
    scale = gamma.astype(jnp.float32) * jax.lax.rsqrt(var + BN_EPS)
    shift = beta.astype(jnp.float32) - mean * scale
    scale2 = scale.reshape(Cout, 1)
    shift2 = shift.reshape(Cout, 1)
    s_spec = pl.BlockSpec((Cout, 1), lambda n, d: (0, 0))

    # ------- pass 2: recompute conv, fused BN affine + ReLU, store -------
    out4 = pl.pallas_call(
        bn_relu_kernel,
        grid=(N, D),
        in_specs=[x_spec(0), x_spec(1), x_spec(2), w_spec, s_spec, s_spec],
        out_specs=pl.BlockSpec((1, 1, Cout, HW), lambda n, d: (n, d, 0, 0)),
        out_shape=jax.ShapeDtypeStruct((N, D, Cout, HW), jnp.float32),
        compiler_params=cparams,
        cost_estimate=pl.CostEstimate(
            flops=2 * M * K * Cout + 3 * M * Cout, transcendentals=0,
            bytes_accessed=in_bytes + M * Cout * 4 + 2 * Cout * 4),
    )(xprep, xprep, xprep, w9, scale2, shift2)

    # only remaining XLA layout op: major-axis D <-> Cout transpose to NCDHW
    out = out4.reshape(N, D, Cout, H, W)
    return jnp.transpose(out, (0, 2, 1, 3, 4))


# --------------------------------------------------------------------------
# Pure-JAX reference (lax conv + BatchNorm(train) + ReLU) for validation.
# --------------------------------------------------------------------------
def _reference_forward(x_ncdhw, w_oidhw, bias, gamma, beta):
    y = jax.lax.conv_general_dilated(
        x_ncdhw.astype(jnp.float32), w_oidhw.astype(jnp.float32),
        window_strides=(1, 1, 1), padding=((1, 1), (1, 1), (1, 1)),
        dimension_numbers=("NCDHW", "OIDHW", "NCDHW"),
        precision=jax.lax.Precision.HIGHEST)
    y = y + bias.reshape(1, -1, 1, 1, 1)
    mean = jnp.mean(y, axis=(0, 2, 3, 4), keepdims=True)
    var = jnp.mean((y - mean) ** 2, axis=(0, 2, 3, 4), keepdims=True)
    xhat = (y - mean) * jax.lax.rsqrt(var + BN_EPS)
    out = gamma.reshape(1, -1, 1, 1, 1) * xhat + beta.reshape(1, -1, 1, 1, 1)
    return jnp.maximum(out, 0.0)


if __name__ == "__main__":
    # Small shapes: batch=2, in_channels=4, out_channels=8, spatial 8x8x8.
    N, Cin, Cout, D, H, W = 2, 4, 8, 8, 8, 8
    KSIZE = 3

    key = jax.random.PRNGKey(0)
    kx, kw, kb = jax.random.split(key, 3)

    x = jax.random.normal(kx, (N, Cin, D, H, W), dtype=jnp.float32)
    fan_in = Cin * KSIZE ** 3
    w = jax.random.normal(kw, (Cout, Cin, KSIZE, KSIZE, KSIZE),
                          dtype=jnp.float32) / jnp.sqrt(fan_in)
    b = jax.random.normal(kb, (Cout,), dtype=jnp.float32) * 0.1
    gamma = jnp.ones((Cout,), dtype=jnp.float32)   # BatchNorm3d default init
    beta = jnp.zeros((Cout,), dtype=jnp.float32)

    out = jax.block_until_ready(conv3d_block_forward(x, w, b, gamma, beta))
    ref = jax.block_until_ready(_reference_forward(x, w, b, gamma, beta))

    np.testing.assert_allclose(np.asarray(out), np.asarray(ref),
                               atol=3e-2, rtol=3e-2)
    assert out.shape == (N, Cout, D, H, W)
    print("KERNEL_OK")
</pallas_src>

<mosaic_0001>
module attributes {stable_mosaic.version = 11 : i64} {
  func.func @stats_kernel(%arg0: i32, %arg1: i32, %arg2: memref<1x80x12xbf16, #tpu.memory_space<vmem>>, %arg3: memref<1x80x12xbf16, #tpu.memory_space<vmem>>, %arg4: memref<1x80x12xbf16, #tpu.memory_space<vmem>>, %arg5: memref<9x8x12xbf16, #tpu.memory_space<vmem>>, %arg6: memref<1x1x8x2xf32, #tpu.memory_space<vmem>>) attributes {dimension_semantics = [#tpu.dimension_semantics<parallel>, #tpu.dimension_semantics<parallel>], iteration_bounds = array<i64: 2, 8>, scalar_prefetch = 0 : i64, scratch_operands = 0 : i64, tpu.core_type = #tpu.core_type<tc>, window_params = [{transform_indices = @transform_0, window_bounds = array<i64: 1, 80, 12>}, {transform_indices = @transform_1, window_bounds = array<i64: 1, 80, 12>}, {transform_indices = @transform_2, window_bounds = array<i64: 1, 80, 12>}, {pipeline_mode = #tpu.pipeline_mode<synchronous>, transform_indices = @transform_3, window_bounds = array<i64: 9, 8, 12>}, {transform_indices = @transform_4, window_bounds = array<i64: 1, 1, 8, 2>}]} {
    %cst = arith.constant 0.000000e+00 : f32
    %0 = vector.broadcast %cst : f32 to vector<8x64xf32>
    %c0 = arith.constant 0 : index
    %c0_0 = arith.constant 0 : index
    %c0_1 = arith.constant 0 : index
    %1 = vector.load %arg2[%c0, %c0_0, %c0_1] : memref<1x80x12xbf16, #tpu.memory_space<vmem>>, vector<1x80x12xbf16>
    %2 = vector.shape_cast %1 : vector<1x80x12xbf16> to vector<80x12xbf16>
    %3 = vector.extract_strided_slice %2 {offsets = [0, 0], sizes = [64, 12], strides = [1, 1]} : vector<80x12xbf16> to vector<64x12xbf16>
    %c0_2 = arith.constant 0 : index
    %c0_3 = arith.constant 0 : index
    %c0_4 = arith.constant 0 : index
    %4 = vector.load %arg5[%c0_2, %c0_3, %c0_4] : memref<9x8x12xbf16, #tpu.memory_space<vmem>>, vector<1x8x12xbf16>
    %5 = vector.shape_cast %4 : vector<1x8x12xbf16> to vector<8x12xbf16>
    %cst_5 = arith.constant dense<0.000000e+00> : vector<8x64xf32>
    %6 = tpu.matmul %5, %3, %cst_5 {dimension_numbers = #tpu.dot_dimension_numbers<[1], [1], [0], [0], [0, 0, 1, 0], [], []>} : vector<8x12xbf16>, vector<64x12xbf16>, vector<8x64xf32> -> vector<8x64xf32>
    %7 = arith.addf %0, %6 : vector<8x64xf32>
    %8 = vector.extract_strided_slice %2 {offsets = [8, 0], sizes = [64, 12], strides = [1, 1]} : vector<80x12xbf16> to vector<64x12xbf16>
    %c1 = arith.constant 1 : index
    %c0_6 = arith.constant 0 : index
    %c0_7 = arith.constant 0 : index
    %9 = vector.load %arg5[%c1, %c0_6, %c0_7] : memref<9x8x12xbf16, #tpu.memory_space<vmem>>, vector<1x8x12xbf16>
    %10 = vector.shape_cast %9 : vector<1x8x12xbf16> to vector<8x12xbf16>
    %cst_8 = arith.constant dense<0.000000e+00> : vector<8x64xf32>
    %11 = tpu.matmul %10, %8, %cst_8 {dimension_numbers = #tpu.dot_dimension_numbers<[1], [1], [0], [0], [0, 0, 1, 0], [], []>} : vector<8x12xbf16>, vector<64x12xbf16>, vector<8x64xf32> -> vector<8x64xf32>
    %12 = arith.addf %7, %11 : vector<8x64xf32>
    %13 = vector.extract_strided_slice %2 {offsets = [16, 0], sizes = [64, 12], strides = [1, 1]} : vector<80x12xbf16> to vector<64x12xbf16>
    %c2 = arith.constant 2 : index
    %c0_9 = arith.constant 0 : index
    %c0_10 = arith.constant 0 : index
    %14 = vector.load %arg5[%c2, %c0_9, %c0_10] : memref<9x8x12xbf16, #tpu.memory_space<vmem>>, vector<1x8x12xbf16>
    %15 = vector.shape_cast %14 : vector<1x8x12xbf16> to vector<8x12xbf16>
    %cst_11 = arith.constant dense<0.000000e+00> : vector<8x64xf32>
    %16 = tpu.matmul %15, %13, %cst_11 {dimension_numbers = #tpu.dot_dimension_numbers<[1], [1], [0], [0], [0, 0, 1, 0], [], []>} : vector<8x12xbf16>, vector<64x12xbf16>, vector<8x64xf32> -> vector<8x64xf32>
    %17 = arith.addf %12, %16 : vector<8x64xf32>
    %c0_12 = arith.constant 0 : index
    %c0_13 = arith.constant 0 : index
    %c0_14 = arith.constant 0 : index
    %18 = vector.load %arg3[%c0_12, %c0_13, %c0_14] : memref<1x80x12xbf16, #tpu.memory_space<vmem>>, vector<1x80x12xbf16>
    %19 = vector.shape_cast %18 : vector<1x80x12xbf16> to vector<80x12xbf16>
    %20 = vector.extract_strided_slice %19 {offsets = [0, 0], sizes = [64, 12], strides = [1, 1]} : vector<80x12xbf16> to vector<64x12xbf16>
    %c3 = arith.constant 3 : index
    %c0_15 = arith.constant 0 : index
    %c0_16 = arith.constant 0 : index
    %21 = vector.load %arg5[%c3, %c0_15, %c0_16] : memref<9x8x12xbf16, #tpu.memory_space<vmem>>, vector<1x8x12xbf16>
    %22 = vector.shape_cast %21 : vector<1x8x12xbf16> to vector<8x12xbf16>
    %cst_17 = arith.constant dense<0.000000e+00> : vector<8x64xf32>
    %23 = tpu.matmul %22, %20, %cst_17 {dimension_numbers = #tpu.dot_dimension_numbers<[1], [1], [0], [0], [0, 0, 1, 0], [], []>} : vector<8x12xbf16>, vector<64x12xbf16>, vector<8x64xf32> -> vector<8x64xf32>
    %24 = arith.addf %17, %23 : vector<8x64xf32>
    %25 = vector.extract_strided_slice %19 {offsets = [8, 0], sizes = [64, 12], strides = [1, 1]} : vector<80x12xbf16> to vector<64x12xbf16>
    %c4 = arith.constant 4 : index
    %c0_18 = arith.constant 0 : index
    %c0_19 = arith.constant 0 : index
    %26 = vector.load %arg5[%c4, %c0_18, %c0_19] : memref<9x8x12xbf16, #tpu.memory_space<vmem>>, vector<1x8x12xbf16>
    %27 = vector.shape_cast %26 : vector<1x8x12xbf16> to vector<8x12xbf16>
    %cst_20 = arith.constant dense<0.000000e+00> : vector<8x64xf32>
    %28 = tpu.matmul %27, %25, %cst_20 {dimension_numbers = #tpu.dot_dimension_numbers<[1], [1], [0], [0], [0, 0, 1, 0], [], []>} : vector<8x12xbf16>, vector<64x12xbf16>, vector<8x64xf32> -> vector<8x64xf32>
    %29 = arith.addf %24, %28 : vector<8x64xf32>
    %30 = vector.extract_strided_slice %19 {offsets = [16, 0], sizes = [64, 12], strides = [1, 1]} : vector<80x12xbf16> to vector<64x12xbf16>
    %c5 = arith.constant 5 : index
    %c0_21 = arith.constant 0 : index
    %c0_22 = arith.constant 0 : index
    %31 = vector.load %arg5[%c5, %c0_21, %c0_22] : memref<9x8x12xbf16, #tpu.memory_space<vmem>>, vector<1x8x12xbf16>
    %32 = vector.shape_cast %31 : vector<1x8x12xbf16> to vector<8x12xbf16>
    %cst_23 = arith.constant dense<0.000000e+00> : vector<8x64xf32>
    %33 = tpu.matmul %32, %30, %cst_23 {dimension_numbers = #tpu.dot_dimension_numbers<[1], [1], [0], [0], [0, 0, 1, 0], [], []>} : vector<8x12xbf16>, vector<64x12xbf16>, vector<8x64xf32> -> vector<8x64xf32>
    %34 = arith.addf %29, %33 : vector<8x64xf32>
    %c0_24 = arith.constant 0 : index
    %c0_25 = arith.constant 0 : index
    %c0_26 = arith.constant 0 : index
    %35 = vector.load %arg4[%c0_24, %c0_25, %c0_26] : memref<1x80x12xbf16, #tpu.memory_space<vmem>>, vector<1x80x12xbf16>
    %36 = vector.shape_cast %35 : vector<1x80x12xbf16> to vector<80x12xbf16>
    %37 = vector.extract_strided_slice %36 {offsets = [0, 0], sizes = [64, 12], strides = [1, 1]} : vector<80x12xbf16> to vector<64x12xbf16>
    %c6 = arith.constant 6 : index
    %c0_27 = arith.constant 0 : index
    %c0_28 = arith.constant 0 : index
    %38 = vector.load %arg5[%c6, %c0_27, %c0_28] : memref<9x8x12xbf16, #tpu.memory_space<vmem>>, vector<1x8x12xbf16>
    %39 = vector.shape_cast %38 : vector<1x8x12xbf16> to vector<8x12xbf16>
    %cst_29 = arith.constant dense<0.000000e+00> : vector<8x64xf32>
    %40 = tpu.matmul %39, %37, %cst_29 {dimension_numbers = #tpu.dot_dimension_numbers<[1], [1], [0], [0], [0, 0, 1, 0], [], []>} : vector<8x12xbf16>, vector<64x12xbf16>, vector<8x64xf32> -> vector<8x64xf32>
    %41 = arith.addf %34, %40 : vector<8x64xf32>
    %42 = vector.extract_strided_slice %36 {offsets = [8, 0], sizes = [64, 12], strides = [1, 1]} : vector<80x12xbf16> to vector<64x12xbf16>
    %c7 = arith.constant 7 : index
    %c0_30 = arith.constant 0 : index
    %c0_31 = arith.constant 0 : index
    %43 = vector.load %arg5[%c7, %c0_30, %c0_31] : memref<9x8x12xbf16, #tpu.memory_space<vmem>>, vector<1x8x12xbf16>
    %44 = vector.shape_cast %43 : vector<1x8x12xbf16> to vector<8x12xbf16>
    %cst_32 = arith.constant dense<0.000000e+00> : vector<8x64xf32>
    %45 = tpu.matmul %44, %42, %cst_32 {dimension_numbers = #tpu.dot_dimension_numbers<[1], [1], [0], [0], [0, 0, 1, 0], [], []>} : vector<8x12xbf16>, vector<64x12xbf16>, vector<8x64xf32> -> vector<8x64xf32>
    %46 = arith.addf %41, %45 : vector<8x64xf32>
    %47 = vector.extract_strided_slice %36 {offsets = [16, 0], sizes = [64, 12], strides = [1, 1]} : vector<80x12xbf16> to vector<64x12xbf16>
    %c8 = arith.constant 8 : index
    %c0_33 = arith.constant 0 : index
    %c0_34 = arith.constant 0 : index
    %48 = vector.load %arg5[%c8, %c0_33, %c0_34] : memref<9x8x12xbf16, #tpu.memory_space<vmem>>, vector<1x8x12xbf16>
    %49 = vector.shape_cast %48 : vector<1x8x12xbf16> to vector<8x12xbf16>
    %cst_35 = arith.constant dense<0.000000e+00> : vector<8x64xf32>
    %50 = tpu.matmul %49, %47, %cst_35 {dimension_numbers = #tpu.dot_dimension_numbers<[1], [1], [0], [0], [0, 0, 1, 0], [], []>} : vector<8x12xbf16>, vector<64x12xbf16>, vector<8x64xf32> -> vector<8x64xf32>
    %51 = arith.addf %46, %50 : vector<8x64xf32>
    %cst_36 = arith.constant dense<0.000000e+00> : vector<8xf32>
    %52 = vector.multi_reduction <add>, %51, %cst_36 [1] : vector<8x64xf32> to vector<8xf32>
    %53 = vector.shape_cast %52 : vector<8xf32> to vector<8x1xf32>
    %54 = arith.mulf %51, %51 : vector<8x64xf32>
    %cst_37 = arith.constant dense<0.000000e+00> : vector<8xf32>
    %55 = vector.multi_reduction <add>, %54, %cst_37 [1] : vector<8x64xf32> to vector<8xf32>
    %56 = vector.shape_cast %55 : vector<8xf32> to vector<8x1xf32>
    %c0_38 = arith.constant 0 : index
    %c0_39 = arith.constant 0 : index
    %c0_40 = arith.constant 0 : index
    %c0_41 = arith.constant 0 : index
    %57 = vector.load %arg6[%c0_38, %c0_39, %c0_40, %c0_41] : memref<1x1x8x2xf32, #tpu.memory_space<vmem>>, vector<1x1x8x1xf32>
    %58 = vector.shape_cast %57 : vector<1x1x8x1xf32> to vector<8x1xf32>
    %59 = vector.shape_cast %53 : vector<8x1xf32> to vector<1x1x8x1xf32>
    tpu.vector_store %arg6[%c0_38, %c0_39, %c0_40, %c0_41], %59 {strides = array<i32>} : memref<1x1x8x2xf32, #tpu.memory_space<vmem>>, vector<1x1x8x1xf32>,
    %c0_42 = arith.constant 0 : index
    %c0_43 = arith.constant 0 : index
    %c0_44 = arith.constant 0 : index
    %c1_45 = arith.constant 1 : index
    %60 = vector.load %arg6[%c0_42, %c0_43, %c0_44, %c1_45] : memref<1x1x8x2xf32, #tpu.memory_space<vmem>>, vector<1x1x8x1xf32>
    %61 = vector.shape_cast %60 : vector<1x1x8x1xf32> to vector<8x1xf32>
    %62 = vector.shape_cast %56 : vector<8x1xf32> to vector<1x1x8x1xf32>
    tpu.vector_store %arg6[%c0_42, %c0_43, %c0_44, %c1_45], %62 {strides = array<i32>} : memref<1x1x8x2xf32, #tpu.memory_space<vmem>>, vector<1x1x8x1xf32>,
    return
  }
  func.func @transform_0(%arg0: i32, %arg1: i32) -> (i32, i32, i32) {
    %c10_i32 = arith.constant 10 : i32
    %0 = arith.muli %arg0, %c10_i32 : i32
    %1 = arith.addi %0, %arg1 : i32
    %c0_i32 = arith.constant 0 : i32
    %2 = arith.addi %1, %c0_i32 : i32
    %c0_i32_0 = arith.constant 0 : i32
    %c0_i32_1 = arith.constant 0 : i32
    %c0_i32_2 = arith.constant 0 : i32
    return %2, %c0_i32_0, %c0_i32_1 : i32, i32, i32
  }
  func.func @transform_1(%arg0: i32, %arg1: i32) -> (i32, i32, i32) {
    %c10_i32 = arith.constant 10 : i32
    %0 = arith.muli %arg0, %c10_i32 : i32
    %1 = arith.addi %0, %arg1 : i32
    %c1_i32 = arith.constant 1 : i32
    %2 = arith.addi %1, %c1_i32 : i32
    %c0_i32 = arith.constant 0 : i32
    %c0_i32_0 = arith.constant 0 : i32
    %c0_i32_1 = arith.constant 0 : i32
    return %2, %c0_i32, %c0_i32_0 : i32, i32, i32
  }
  func.func @transform_2(%arg0: i32, %arg1: i32) -> (i32, i32, i32) {
    %c10_i32 = arith.constant 10 : i32
    %0 = arith.muli %arg0, %c10_i32 : i32
    %1 = arith.addi %0, %arg1 : i32
    %c2_i32 = arith.constant 2 : i32
    %2 = arith.addi %1, %c2_i32 : i32
    %c0_i32 = arith.constant 0 : i32
    %c0_i32_0 = arith.constant 0 : i32
    %c0_i32_1 = arith.constant 0 : i32
    return %2, %c0_i32, %c0_i32_0 : i32, i32, i32
  }
  func.func @transform_3(%arg0: i32, %arg1: i32) -> (i32, i32, i32) {
    %c0_i32 = arith.constant 0 : i32
    %c0_i32_0 = arith.constant 0 : i32
    %c0_i32_1 = arith.constant 0 : i32
    %c0_i32_2 = arith.constant 0 : i32
    return %c0_i32, %c0_i32_0, %c0_i32_1 : i32, i32, i32
  }
  func.func @transform_4(%arg0: i32, %arg1: i32) -> (i32, i32, i32, i32) {
    %c0_i32 = arith.constant 0 : i32
    %c0_i32_0 = arith.constant 0 : i32
    %c0_i32_1 = arith.constant 0 : i32
    return %arg0, %arg1, %c0_i32, %c0_i32_0 : i32, i32, i32, i32
  }
}

module attributes {stable_mosaic.version = 11 : i64} {
  func.func @bn_relu_kernel(%arg0: i32, %arg1: i32, %arg2: memref<1x80x12xbf16, #tpu.memory_space<vmem>>, %arg3: memref<1x80x12xbf16, #tpu.memory_space<vmem>>, %arg4: memref<1x80x12xbf16, #tpu.memory_space<vmem>>, %arg5: memref<9x8x12xbf16, #tpu.memory_space<vmem>>, %arg6: memref<8x1xf32, #tpu.memory_space<vmem>>, %arg7: memref<8x1xf32, #tpu.memory_space<vmem>>, %arg8: memref<1x1x8x64xf32, #tpu.memory_space<vmem>>) attributes {dimension_semantics = [#tpu.dimension_semantics<parallel>, #tpu.dimension_semantics<parallel>], iteration_bounds = array<i64: 2, 8>, scalar_prefetch = 0 : i64, scratch_operands = 0 : i64, tpu.core_type = #tpu.core_type<tc>, window_params = [{transform_indices = @transform_0, window_bounds = array<i64: 1, 80, 12>}, {transform_indices = @transform_1, window_bounds = array<i64: 1, 80, 12>}, {transform_indices = @transform_2, window_bounds = array<i64: 1, 80, 12>}, {pipeline_mode = #tpu.pipeline_mode<synchronous>, transform_indices = @transform_3, window_bounds = array<i64: 9, 8, 12>}, {pipeline_mode = #tpu.pipeline_mode<synchronous>, transform_indices = @transform_4, window_bounds = array<i64: 8, 1>}, {pipeline_mode = #tpu.pipeline_mode<synchronous>, transform_indices = @transform_5, window_bounds = array<i64: 8, 1>}, {transform_indices = @transform_6, window_bounds = array<i64: 1, 1, 8, 64>}]} {
    %cst = arith.constant 0.000000e+00 : f32
    %0 = vector.broadcast %cst : f32 to vector<8x64xf32>
    %c0 = arith.constant 0 : index
    %c0_0 = arith.constant 0 : index
    %c0_1 = arith.constant 0 : index
    %1 = vector.load %arg2[%c0, %c0_0, %c0_1] : memref<1x80x12xbf16, #tpu.memory_space<vmem>>, vector<1x80x12xbf16>
    %2 = vector.shape_cast %1 : vector<1x80x12xbf16> to vector<80x12xbf16>
    %3 = vector.extract_strided_slice %2 {offsets = [0, 0], sizes = [64, 12], strides = [1, 1]} : vector<80x12xbf16> to vector<64x12xbf16>
    %c0_2 = arith.constant 0 : index
    %c0_3 = arith.constant 0 : index
    %c0_4 = arith.constant 0 : index
    %4 = vector.load %arg5[%c0_2, %c0_3, %c0_4] : memref<9x8x12xbf16, #tpu.memory_space<vmem>>, vector<1x8x12xbf16>
    %5 = vector.shape_cast %4 : vector<1x8x12xbf16> to vector<8x12xbf16>
    %cst_5 = arith.constant dense<0.000000e+00> : vector<8x64xf32>
    %6 = tpu.matmul %5, %3, %cst_5 {dimension_numbers = #tpu.dot_dimension_numbers<[1], [1], [0], [0], [0, 0, 1, 0], [], []>} : vector<8x12xbf16>, vector<64x12xbf16>, vector<8x64xf32> -> vector<8x64xf32>
    %7 = arith.addf %0, %6 : vector<8x64xf32>
    %8 = vector.extract_strided_slice %2 {offsets = [8, 0], sizes = [64, 12], strides = [1, 1]} : vector<80x12xbf16> to vector<64x12xbf16>
    %c1 = arith.constant 1 : index
    %c0_6 = arith.constant 0 : index
    %c0_7 = arith.constant 0 : index
    %9 = vector.load %arg5[%c1, %c0_6, %c0_7] : memref<9x8x12xbf16, #tpu.memory_space<vmem>>, vector<1x8x12xbf16>
    %10 = vector.shape_cast %9 : vector<1x8x12xbf16> to vector<8x12xbf16>
    %cst_8 = arith.constant dense<0.000000e+00> : vector<8x64xf32>
    %11 = tpu.matmul %10, %8, %cst_8 {dimension_numbers = #tpu.dot_dimension_numbers<[1], [1], [0], [0], [0, 0, 1, 0], [], []>} : vector<8x12xbf16>, vector<64x12xbf16>, vector<8x64xf32> -> vector<8x64xf32>
    %12 = arith.addf %7, %11 : vector<8x64xf32>
    %13 = vector.extract_strided_slice %2 {offsets = [16, 0], sizes = [64, 12], strides = [1, 1]} : vector<80x12xbf16> to vector<64x12xbf16>
    %c2 = arith.constant 2 : index
    %c0_9 = arith.constant 0 : index
    %c0_10 = arith.constant 0 : index
    %14 = vector.load %arg5[%c2, %c0_9, %c0_10] : memref<9x8x12xbf16, #tpu.memory_space<vmem>>, vector<1x8x12xbf16>
    %15 = vector.shape_cast %14 : vector<1x8x12xbf16> to vector<8x12xbf16>
    %cst_11 = arith.constant dense<0.000000e+00> : vector<8x64xf32>
    %16 = tpu.matmul %15, %13, %cst_11 {dimension_numbers = #tpu.dot_dimension_numbers<[1], [1], [0], [0], [0, 0, 1, 0], [], []>} : vector<8x12xbf16>, vector<64x12xbf16>, vector<8x64xf32> -> vector<8x64xf32>
    %17 = arith.addf %12, %16 : vector<8x64xf32>
    %c0_12 = arith.constant 0 : index
    %c0_13 = arith.constant 0 : index
    %c0_14 = arith.constant 0 : index
    %18 = vector.load %arg3[%c0_12, %c0_13, %c0_14] : memref<1x80x12xbf16, #tpu.memory_space<vmem>>, vector<1x80x12xbf16>
    %19 = vector.shape_cast %18 : vector<1x80x12xbf16> to vector<80x12xbf16>
    %20 = vector.extract_strided_slice %19 {offsets = [0, 0], sizes = [64, 12], strides = [1, 1]} : vector<80x12xbf16> to vector<64x12xbf16>
    %c3 = arith.constant 3 : index
    %c0_15 = arith.constant 0 : index
    %c0_16 = arith.constant 0 : index
    %21 = vector.load %arg5[%c3, %c0_15, %c0_16] : memref<9x8x12xbf16, #tpu.memory_space<vmem>>, vector<1x8x12xbf16>
    %22 = vector.shape_cast %21 : vector<1x8x12xbf16> to vector<8x12xbf16>
    %cst_17 = arith.constant dense<0.000000e+00> : vector<8x64xf32>
    %23 = tpu.matmul %22, %20, %cst_17 {dimension_numbers = #tpu.dot_dimension_numbers<[1], [1], [0], [0], [0, 0, 1, 0], [], []>} : vector<8x12xbf16>, vector<64x12xbf16>, vector<8x64xf32> -> vector<8x64xf32>
    %24 = arith.addf %17, %23 : vector<8x64xf32>
    %25 = vector.extract_strided_slice %19 {offsets = [8, 0], sizes = [64, 12], strides = [1, 1]} : vector<80x12xbf16> to vector<64x12xbf16>
    %c4 = arith.constant 4 : index
    %c0_18 = arith.constant 0 : index
    %c0_19 = arith.constant 0 : index
    %26 = vector.load %arg5[%c4, %c0_18, %c0_19] : memref<9x8x12xbf16, #tpu.memory_space<vmem>>, vector<1x8x12xbf16>
    %27 = vector.shape_cast %26 : vector<1x8x12xbf16> to vector<8x12xbf16>
    %cst_20 = arith.constant dense<0.000000e+00> : vector<8x64xf32>
    %28 = tpu.matmul %27, %25, %cst_20 {dimension_numbers = #tpu.dot_dimension_numbers<[1], [1], [0], [0], [0, 0, 1, 0], [], []>} : vector<8x12xbf16>, vector<64x12xbf16>, vector<8x64xf32> -> vector<8x64xf32>
    %29 = arith.addf %24, %28 : vector<8x64xf32>
    %30 = vector.extract_strided_slice %19 {offsets = [16, 0], sizes = [64, 12], strides = [1, 1]} : vector<80x12xbf16> to vector<64x12xbf16>
    %c5 = arith.constant 5 : index
    %c0_21 = arith.constant 0 : index
    %c0_22 = arith.constant 0 : index
    %31 = vector.load %arg5[%c5, %c0_21, %c0_22] : memref<9x8x12xbf16, #tpu.memory_space<vmem>>, vector<1x8x12xbf16>
    %32 = vector.shape_cast %31 : vector<1x8x12xbf16> to vector<8x12xbf16>
    %cst_23 = arith.constant dense<0.000000e+00> : vector<8x64xf32>
    %33 = tpu.matmul %32, %30, %cst_23 {dimension_numbers = #tpu.dot_dimension_numbers<[1], [1], [0], [0], [0, 0, 1, 0], [], []>} : vector<8x12xbf16>, vector<64x12xbf16>, vector<8x64xf32> -> vector<8x64xf32>
    %34 = arith.addf %29, %33 : vector<8x64xf32>
    %c0_24 = arith.constant 0 : index
    %c0_25 = arith.constant 0 : index
    %c0_26 = arith.constant 0 : index
    %35 = vector.load %arg4[%c0_24, %c0_25, %c0_26] : memref<1x80x12xbf16, #tpu.memory_space<vmem>>, vector<1x80x12xbf16>
    %36 = vector.shape_cast %35 : vector<1x80x12xbf16> to vector<80x12xbf16>
    %37 = vector.extract_strided_slice %36 {offsets = [0, 0], sizes = [64, 12], strides = [1, 1]} : vector<80x12xbf16> to vector<64x12xbf16>
    %c6 = arith.constant 6 : index
    %c0_27 = arith.constant 0 : index
    %c0_28 = arith.constant 0 : index
    %38 = vector.load %arg5[%c6, %c0_27, %c0_28] : memref<9x8x12xbf16, #tpu.memory_space<vmem>>, vector<1x8x12xbf16>
    %39 = vector.shape_cast %38 : vector<1x8x12xbf16> to vector<8x12xbf16>
    %cst_29 = arith.constant dense<0.000000e+00> : vector<8x64xf32>
    %40 = tpu.matmul %39, %37, %cst_29 {dimension_numbers = #tpu.dot_dimension_numbers<[1], [1], [0], [0], [0, 0, 1, 0], [], []>} : vector<8x12xbf16>, vector<64x12xbf16>, vector<8x64xf32> -> vector<8x64xf32>
    %41 = arith.addf %34, %40 : vector<8x64xf32>
    %42 = vector.extract_strided_slice %36 {offsets = [8, 0], sizes = [64, 12], strides = [1, 1]} : vector<80x12xbf16> to vector<64x12xbf16>
    %c7 = arith.constant 7 : index
    %c0_30 = arith.constant 0 : index
    %c0_31 = arith.constant 0 : index
    %43 = vector.load %arg5[%c7, %c0_30, %c0_31] : memref<9x8x12xbf16, #tpu.memory_space<vmem>>, vector<1x8x12xbf16>
    %44 = vector.shape_cast %43 : vector<1x8x12xbf16> to vector<8x12xbf16>
    %cst_32 = arith.constant dense<0.000000e+00> : vector<8x64xf32>
    %45 = tpu.matmul %44, %42, %cst_32 {dimension_numbers = #tpu.dot_dimension_numbers<[1], [1], [0], [0], [0, 0, 1, 0], [], []>} : vector<8x12xbf16>, vector<64x12xbf16>, vector<8x64xf32> -> vector<8x64xf32>
    %46 = arith.addf %41, %45 : vector<8x64xf32>
    %47 = vector.extract_strided_slice %36 {offsets = [16, 0], sizes = [64, 12], strides = [1, 1]} : vector<80x12xbf16> to vector<64x12xbf16>
    %c8 = arith.constant 8 : index
    %c0_33 = arith.constant 0 : index
    %c0_34 = arith.constant 0 : index
    %48 = vector.load %arg5[%c8, %c0_33, %c0_34] : memref<9x8x12xbf16, #tpu.memory_space<vmem>>, vector<1x8x12xbf16>
    %49 = vector.shape_cast %48 : vector<1x8x12xbf16> to vector<8x12xbf16>
    %cst_35 = arith.constant dense<0.000000e+00> : vector<8x64xf32>
    %50 = tpu.matmul %49, %47, %cst_35 {dimension_numbers = #tpu.dot_dimension_numbers<[1], [1], [0], [0], [0, 0, 1, 0], [], []>} : vector<8x12xbf16>, vector<64x12xbf16>, vector<8x64xf32> -> vector<8x64xf32>
    %51 = arith.addf %46, %50 : vector<8x64xf32>
    %c0_36 = arith.constant 0 : index
    %c0_37 = arith.constant 0 : index
    %52 = vector.load %arg6[%c0_36, %c0_37] : memref<8x1xf32, #tpu.memory_space<vmem>>, vector<8x1xf32>
    %53 = vector.broadcast %52 : vector<8x1xf32> to vector<8x64xf32>
    %54 = arith.mulf %51, %53 : vector<8x64xf32>
    %c0_38 = arith.constant 0 : index
    %c0_39 = arith.constant 0 : index
    %55 = vector.load %arg7[%c0_38, %c0_39] : memref<8x1xf32, #tpu.memory_space<vmem>>, vector<8x1xf32>
    %56 = vector.broadcast %55 : vector<8x1xf32> to vector<8x64xf32>
    %57 = arith.addf %54, %56 : vector<8x64xf32>
    %cst_40 = arith.constant 0.000000e+00 : f32
    %58 = vector.broadcast %cst_40 : f32 to vector<8x64xf32>
    %59 = arith.maximumf %57, %58 : vector<8x64xf32>
    %c0_41 = arith.constant 0 : index
    %c0_42 = arith.constant 0 : index
    %c0_43 = arith.constant 0 : index
    %c0_44 = arith.constant 0 : index
    %60 = vector.load %arg8[%c0_41, %c0_42, %c0_43, %c0_44] : memref<1x1x8x64xf32, #tpu.memory_space<vmem>>, vector<1x1x8x64xf32>
    %61 = vector.shape_cast %60 : vector<1x1x8x64xf32> to vector<8x64xf32>
    %62 = vector.shape_cast %59 : vector<8x64xf32> to vector<1x1x8x64xf32>
    tpu.vector_store %arg8[%c0_41, %c0_42, %c0_43, %c0_44], %62 {strides = array<i32>} : memref<1x1x8x64xf32, #tpu.memory_space<vmem>>, vector<1x1x8x64xf32>,
    return
  }
  func.func @transform_0(%arg0: i32, %arg1: i32) -> (i32, i32, i32) {
    %c10_i32 = arith.constant 10 : i32
    %0 = arith.muli %arg0, %c10_i32 : i32
    %1 = arith.addi %0, %arg1 : i32
    %c0_i32 = arith.constant 0 : i32
    %2 = arith.addi %1, %c0_i32 : i32
    %c0_i32_0 = arith.constant 0 : i32
    %c0_i32_1 = arith.constant 0 : i32
    %c0_i32_2 = arith.constant 0 : i32
    return %2, %c0_i32_0, %c0_i32_1 : i32, i32, i32
  }
  func.func @transform_1(%arg0: i32, %arg1: i32) -> (i32, i32, i32) {
    %c10_i32 = arith.constant 10 : i32
    %0 = arith.muli %arg0, %c10_i32 : i32
    %1 = arith.addi %0, %arg1 : i32
    %c1_i32 = arith.constant 1 : i32
    %2 = arith.addi %1, %c1_i32 : i32
    %c0_i32 = arith.constant 0 : i32
    %c0_i32_0 = arith.constant 0 : i32
    %c0_i32_1 = arith.constant 0 : i32
    return %2, %c0_i32, %c0_i32_0 : i32, i32, i32
  }
  func.func @transform_2(%arg0: i32, %arg1: i32) -> (i32, i32, i32) {
    %c10_i32 = arith.constant 10 : i32
    %0 = arith.muli %arg0, %c10_i32 : i32
    %1 = arith.addi %0, %arg1 : i32
    %c2_i32 = arith.constant 2 : i32
    %2 = arith.addi %1, %c2_i32 : i32
    %c0_i32 = arith.constant 0 : i32
    %c0_i32_0 = arith.constant 0 : i32
    %c0_i32_1 = arith.constant 0 : i32
    return %2, %c0_i32, %c0_i32_0 : i32, i32, i32
  }
  func.func @transform_3(%arg0: i32, %arg1: i32) -> (i32, i32, i32) {
    %c0_i32 = arith.constant 0 : i32
    %c0_i32_0 = arith.constant 0 : i32
    %c0_i32_1 = arith.constant 0 : i32
    %c0_i32_2 = arith.constant 0 : i32
    return %c0_i32, %c0_i32_0, %c0_i32_1 : i32, i32, i32
  }
  func.func @transform_4(%arg0: i32, %arg1: i32) -> (i32, i32) {
    %c0_i32 = arith.constant 0 : i32
    %c0_i32_0 = arith.constant 0 : i32
    %c0_i32_1 = arith.constant 0 : i32
    return %c0_i32, %c0_i32_0 : i32, i32
  }
  func.func @transform_5(%arg0: i32, %arg1: i32) -> (i32, i32) {
    %c0_i32 = arith.constant 0 : i32
    %c0_i32_0 = arith.constant 0 : i32
    %c0_i32_1 = arith.constant 0 : i32
    return %c0_i32, %c0_i32_0 : i32, i32
  }
  func.func @transform_6(%arg0: i32, %arg1: i32) -> (i32, i32, i32, i32) {
    %c0_i32 = arith.constant 0 : i32
    %c0_i32_0 = arith.constant 0 : i32
    %c0_i32_1 = arith.constant 0 : i32
    return %arg0, %arg1, %c0_i32, %c0_i32_0 : i32, i32, i32, i32
  }
}

</mosaic_0001>

<llo_original>
// kernel: conv3d_block_forward.2
$region0: #{conv3d_block_forward.2}
  #allocation0 [shape = 'u32[]', space=smem, size = 0x4, offset = 0x4, fixed_abs, tag = 'smem constant byte address 0x4 - core index']
  #allocation1 [shape = 'u32[144,128]{1,0:T(1,128)}', space=vmem, size = 0x12000, scoped, tag = 'internal scratch']
  %s0 = inlined_call_operand.vmem [shape: bf16[20,80,12], index: 0, kind: input, shape index: {}, may-alias: {0,1,2}]
  %s1 = inlined_call_operand.vmem [shape: bf16[20,80,12], index: 1, kind: input, shape index: {}, may-alias: {0,1,2}]
  %s2 = inlined_call_operand.vmem [shape: bf16[20,80,12], index: 2, kind: input, shape index: {}, may-alias: {0,1,2}]
  %s3 = inlined_call_operand.vmem [shape: bf16[9,8,12], index: 3, kind: input, shape index: {}]
  %s4 = inlined_call_operand.vmem [shape: f32[2,8,8,2], index: 4, kind: output, shape index: {}]
  %s5 = sld [smem:[#allocation0]]
  $region49: #{conv3d_block_forward.2} parent=0
    _
  %s7 = ssub.s32 1, %s5
  %s8 = scalar_select 0, %s7, %s5
  loop: start=0, step=1, limit=18
  $region2: #{conv3d_block_forward.2} parent=0 // loop_pre_header
    _
  $region3: #{conv3d_block_forward.2} parent=0 // loop_header
    %s10 = sphi 0, %s14
    %p11 = scmp.ge.s32.totalorder %s10, 18
    %s17 = sphi 0, %s29
    %s18 = sphi 0, %s25
    %s19 = sphi 0, %s17
    %s20 = sphi 0, %s18
    %s21 = sphi 0, %s19
    %s22 = sphi 0, %s20
    %s36 = sphi 0, %s38
    %s39 = sphi 0, %s36
    %s40 = sphi 0, %s39
    %s56 = sphi 0, %s40
    %s68 = sphi 0, %s70
    %s71 = sphi 0, %s68
    %s72 = sphi 0, %s71
    %s88 = sphi 0, %s72
    %s100 = sphi 0, %s102
    %s103 = sphi 0, %s100
    %s104 = sphi 0, %s103
    %s120 = sphi 0, %s104
    %s124 = sphi 0, %s124
    %s126 = sphi 0, %s124
    %s127 = sphi 0, %s126
    %s141 = sphi 0, %s127
    %s149 = sphi 0, %s151
    %s152 = sphi 0, %s149
    %s153 = sphi 0, %s152
    %s169 = sphi 0, %s153
  $region4: #{conv3d_block_forward.2} parent=0 // loop_header_branch
    %13 = sbr.rel (%p11) target = $region8
  $region5: #{conv3d_block_forward.2} parent=0 // loop_body
    %s15 = ssub.s32 %s10, 1
    %s16 = ssub.s32 %s10, 2
    %s23 = sadd.s32 1, %s18
    %p24 = scmp.ge.s32.totalorder %s23, 8
    %s25 = scalar_select %p24, 0, %s23
    %s26 = sadd.s32 1, %s17
    %s27 = scalar_select %p24, %s26, %s17
    %p28 = scmp.ge.s32.totalorder %s27, 2
    %s29 = scalar_select %p28, 0, %s27
    %s30 = smul.u32 %s17, 10
    %s31 = sadd.s32 %s30, %s18
    %s32 = smul.u32 %s29, 10
    %s33 = sadd.s32 %s32, %s25
    %s34 = ssub.s32 %s31, %s33
    %p35 = scmp.eq.s32.totalorder %s34, 0
    %s37 = sadd.s32 %s36, 1
    %s38 = scalar_select %p35, %s36, %s37
    %p41 = pneg %p35
    %p42 = scmp.eq.s32.totalorder %s10, 15
    %p43 = por %p41, %p42
    %p44 = scmp.ne.s32.totalorder %s36, %s39
    %p45 = scmp.eq.s32.totalorder %s10, 0
    %p46 = por %p44, %p45
    %p47 = scmp.ne.s32.totalorder %s36, %s39
    %p48 = scmp.eq.s32.totalorder %s15, 15
    %p49 = por %p47, %p48
    %p50 = scmp.ne.s32.totalorder %s39, %s40
    %p51 = scmp.eq.s32.totalorder %s15, 0
    %p52 = por %p50, %p51
    %p53 = scmp.ne.s32.totalorder %s39, %s40
    %p54 = scmp.eq.s32.totalorder %s16, 15
    %p55 = por %p53, %p54
    %p57 = scmp.ne.s32.totalorder %s40, %s56
    %p58 = scmp.eq.s32.totalorder %s16, 0
    %p59 = por %p57, %p58
    %s60 = smul.u32 %s17, 10
    %s61 = sadd.s32 %s60, %s18
    %s62 = sadd.s32 %s61, 1
    %s63 = smul.u32 %s29, 10
    %s64 = sadd.s32 %s63, %s25
    %s65 = sadd.s32 %s64, 1
    %s66 = ssub.s32 %s62, %s65
    %p67 = scmp.eq.s32.totalorder %s66, 0
    %s69 = sadd.s32 %s68, 1
    %s70 = scalar_select %p67, %s68, %s69
    %p73 = pneg %p67
    %p74 = scmp.eq.s32.totalorder %s10, 15
    %p75 = por %p73, %p74
    %p76 = scmp.ne.s32.totalorder %s68, %s71
    %p77 = scmp.eq.s32.totalorder %s10, 0
    %p78 = por %p76, %p77
    %p79 = scmp.ne.s32.totalorder %s68, %s71
    %p80 = scmp.eq.s32.totalorder %s15, 15
    %p81 = por %p79, %p80
    %p82 = scmp.ne.s32.totalorder %s71, %s72
    %p83 = scmp.eq.s32.totalorder %s15, 0
    %p84 = por %p82, %p83
    %p85 = scmp.ne.s32.totalorder %s71, %s72
    %p86 = scmp.eq.s32.totalorder %s16, 15
    %p87 = por %p85, %p86
    %p89 = scmp.ne.s32.totalorder %s72, %s88
    %p90 = scmp.eq.s32.totalorder %s16, 0
    %p91 = por %p89, %p90
    %s92 = smul.u32 %s17, 10
    %s93 = sadd.s32 %s92, %s18
    %s94 = sadd.s32 %s93, 2
    %s95 = smul.u32 %s29, 10
    %s96 = sadd.s32 %s95, %s25
    %s97 = sadd.s32 %s96, 2
    %s98 = ssub.s32 %s94, %s97
    %p99 = scmp.eq.s32.totalorder %s98, 0
    %s101 = sadd.s32 %s100, 1
    %s102 = scalar_select %p99, %s100, %s101
    %p105 = pneg %p99
    %p106 = scmp.eq.s32.totalorder %s10, 15
    %p107 = por %p105, %p106
    %p108 = scmp.ne.s32.totalorder %s100, %s103
    %p109 = scmp.eq.s32.totalorder %s10, 0
    %p110 = por %p108, %p109
    %p111 = scmp.ne.s32.totalorder %s100, %s103
    %p112 = scmp.eq.s32.totalorder %s15, 15
    %p113 = por %p111, %p112
    %p114 = scmp.ne.s32.totalorder %s103, %s104
    %p115 = scmp.eq.s32.totalorder %s15, 0
    %p116 = por %p114, %p115
    %p117 = scmp.ne.s32.totalorder %s103, %s104
    %p118 = scmp.eq.s32.totalorder %s16, 15
    %p119 = por %p117, %p118
    %p121 = scmp.ne.s32.totalorder %s104, %s120
    %p122 = scmp.eq.s32.totalorder %s16, 0
    %p123 = por %p121, %p122
    %s125 = sadd.s32 %s124, 1
    %p128 = scmp.eq.s32.totalorder %s10, 15
    %p129 = scmp.ne.s32.totalorder %s124, %s126
    %p130 = scmp.eq.s32.totalorder %s10, 0
    %p131 = por %p129, %p130
    %p132 = scmp.ne.s32.totalorder %s124, %s126
    %p133 = scmp.eq.s32.totalorder %s15, 15
    %p134 = por %p132, %p133
    %p135 = scmp.ne.s32.totalorder %s126, %s127
    %p136 = scmp.eq.s32.totalorder %s15, 0
    %p137 = por %p135, %p136
    %p138 = scmp.ne.s32.totalorder %s126, %s127
    %p139 = scmp.eq.s32.totalorder %s16, 15
    %p140 = por %p138, %p139
    %p142 = scmp.ne.s32.totalorder %s127, %s141
    %p143 = scmp.eq.s32.totalorder %s16, 0
    %p144 = por %p142, %p143
    %s145 = ssub.s32 %s17, %s29
    %s146 = ssub.s32 %s18, %s25
    %s147 = sor.u32 %s145, %s146
    %p148 = scmp.eq.s32.totalorder %s147, 0
    %s150 = sadd.s32 %s149, 1
    %s151 = scalar_select %p148, %s149, %s150
    %p154 = pneg %p148
    %p155 = scmp.eq.s32.totalorder %s10, 15
    %p156 = por %p154, %p155
    %p157 = scmp.ne.s32.totalorder %s149, %s152
    %p158 = scmp.eq.s32.totalorder %s10, 0
    %p159 = por %p157, %p158
    %p160 = scmp.ne.s32.totalorder %s149, %s152
    %p161 = scmp.eq.s32.totalorder %s15, 15
    %p162 = por %p160, %p161
    %p163 = scmp.ne.s32.totalorder %s152, %s153
    %p164 = scmp.eq.s32.totalorder %s15, 0
    %p165 = por %p163, %p164
    %p166 = scmp.ne.s32.totalorder %s152, %s153
    %p167 = scmp.eq.s32.totalorder %s16, 15
    %p168 = por %p166, %p167
    %p170 = scmp.ne.s32.totalorder %s153, %s169
    %p171 = scmp.eq.s32.totalorder %s16, 0
    %p172 = por %p170, %p171
    %p173 = scmp.le.s32.totalorder 1, %s10
    %p174 = scmp.lt.s32.totalorder %s10, 17
    %p175 = pnand %p173, %p174
    %p176 = pneg %p175
    // Predicated region
    $region9: #{conv3d_block_forward.2} parent=5 // pred_check
      _
    $region10: #{conv3d_block_forward.2} parent=5 // pred_check_branch
      %178 = sbr.rel (%p175) target = $region12
    $region11: #{conv3d_block_forward.2} parent=5 // pred_region
      %s179 = ssub.s32 %s10, 1
      // Predicated region
      $region13: #{conv3d_block_forward.2} parent=11 // pred_check
        %p180 = pneg %p137
      $region14: #{conv3d_block_forward.2} parent=11 // pred_check_branch
        %182 = sbr.rel (%p180) target = $region16
      $region15: #{conv3d_block_forward.2} parent=11 // pred_region
        _
      $region16: #{conv3d_block_forward.2} parent=11 // pred_fallthru
        _
    $region12: #{conv3d_block_forward.2} parent=5 // pred_fallthru
      _
    %p183 = scmp.lt.s32.totalorder %s10, 16
    // Predicated region
    $region17: #{conv3d_block_forward.2} parent=5 // pred_check
      %p184 = pneg %p183
    $region18: #{conv3d_block_forward.2} parent=5 // pred_check_branch
      %186 = sbr.rel (%p184) target = $region20
    $region19: #{conv3d_block_forward.2} parent=5 // pred_region
      // Predicated region
      $region21: #{conv3d_block_forward.2} parent=19 // pred_check
        %p187 = pneg %p46
      $region22: #{conv3d_block_forward.2} parent=19 // pred_check_branch
        %189 = sbr.rel (%p187) target = $region24
      $region23: #{conv3d_block_forward.2} parent=19 // pred_region
        %s190 = smul.u32 %s17, 10
        %s191 = sadd.s32 %s190, %s18
        %p192 = scmp.lt.s32.totalorder %s191, 19
        %s193 = scalar_select %p192, %s191, 19
        %s194 = smul.addr %s193, 10
        %s195 = smul.addr %s194, 4
        %s196 = scalar_lea.vmem %s0, %s195
        %s197 = smul.u32 %s17, 10
        %s198 = sadd.s32 %s197, %s18
      $region24: #{conv3d_block_forward.2} parent=19 // pred_fallthru
        _
      // Predicated region
      $region25: #{conv3d_block_forward.2} parent=19 // pred_check
        %p199 = pneg %p78
      $region26: #{conv3d_block_forward.2} parent=19 // pred_check_branch
        %201 = sbr.rel (%p199) target = $region28
      $region27: #{conv3d_block_forward.2} parent=19 // pred_region
        %s202 = smul.u32 %s17, 10
        %s203 = sadd.s32 %s202, %s18
        %s204 = sadd.s32 %s203, 1
        %p205 = scmp.lt.s32.totalorder %s204, 19
        %s206 = scalar_select %p205, %s204, 19
        %s207 = smul.addr %s206, 10
        %s208 = smul.addr %s207, 4
        %s209 = scalar_lea.vmem %s1, %s208
        %s210 = smul.u32 %s17, 10
        %s211 = sadd.s32 %s210, %s18
        %s212 = sadd.s32 %s211, 1
      $region28: #{conv3d_block_forward.2} parent=19 // pred_fallthru
        _
      // Predicated region
      $region29: #{conv3d_block_forward.2} parent=19 // pred_check
        %p213 = pneg %p110
      $region30: #{conv3d_block_forward.2} parent=19 // pred_check_branch
        %215 = sbr.rel (%p213) target = $region32
      $region31: #{conv3d_block_forward.2} parent=19 // pred_region
        %s216 = smul.u32 %s17, 10
        %s217 = sadd.s32 %s216, %s18
        %s218 = sadd.s32 %s217, 2
        %p219 = scmp.lt.s32.totalorder %s218, 19
        %s220 = scalar_select %p219, %s218, 19
        %s221 = smul.addr %s220, 10
        %s222 = smul.addr %s221, 4
        %s223 = scalar_lea.vmem %s2, %s222
        %s224 = smul.u32 %s17, 10
        %s225 = sadd.s32 %s224, %s18
        %s226 = sadd.s32 %s225, 2
      $region32: #{conv3d_block_forward.2} parent=19 // pred_fallthru
        _
    $region20: #{conv3d_block_forward.2} parent=5 // pred_fallthru
      _
    %p227 = scmp.le.s32.totalorder 1, %s10
    %p228 = scmp.lt.s32.totalorder %s10, 17
    %p229 = pnand %p227, %p228
    %p230 = pneg %p229
    // Predicated region
    $region33: #{conv3d_block_forward.2} parent=5 // pred_check
      _
    $region34: #{conv3d_block_forward.2} parent=5 // pred_check_branch
      %232 = sbr.rel (%p229) target = $region36
    $region35: #{conv3d_block_forward.2} parent=5 // pred_region
      %s233 = ssub.s32 %s10, 1
      %s234 = smul.u32 %s19, 10
      %s235 = sadd.s32 %s234, %s20
      %p236 = scmp.lt.s32.totalorder %s235, 19
      %s237 = scalar_select %p236, %s235, 19
      %s238 = smul.addr %s237, 10
      %s239 = smul.addr %s238, 4
      %s240 = scalar_lea.vmem %s0, %s239
      %p241 = pneg %p52
      %p242 = pneg %p49
      %s243 = smul.u32 %s19, 10
      %s244 = sadd.s32 %s243, %s20
      %s245 = sadd.s32 %s244, 1
      %p246 = scmp.lt.s32.totalorder %s245, 19
      %s247 = scalar_select %p246, %s245, 19
      %s248 = smul.addr %s247, 10
      %s249 = smul.addr %s248, 4
      %s250 = scalar_lea.vmem %s1, %s249
      %p251 = pneg %p84
      %p252 = pneg %p81
      %s253 = smul.u32 %s19, 10
      %s254 = sadd.s32 %s253, %s20
      %s255 = sadd.s32 %s254, 2
      %p256 = scmp.lt.s32.totalorder %s255, 19
      %s257 = scalar_select %p256, %s255, 19
      %s258 = smul.addr %s257, 10
      %s259 = smul.addr %s258, 4
      %s260 = scalar_lea.vmem %s2, %s259
      %p261 = pneg %p116
      %p262 = pneg %p113
      %p263 = pneg %p137
      %p264 = pneg %p134
      %p265 = pneg %p165
      %p266 = pneg %p162
      %p267 = scmp.lt.s32.totalorder %s19, 1
      %s268 = scalar_select %p267, %s19, 1
      %p269 = scmp.lt.s32.totalorder %s20, 7
      %s270 = scalar_select %p269, %s20, 7
      %s271 = smul.addr %s268, 8
      %s272 = sadd.s32 %s270, %s271
      %s273 = smul.addr %s272, 8
      %s274 = scalar_lea.vmem %s4, %s273
      %s275 = smul.u32 %s19, 10
      %s276 = sadd.s32 %s275, %s20
      %p277 = scmp.lt.s32.totalorder %s276, 19
      %s278 = scalar_select %p277, %s276, 19
      %s279 = smul.addr %s278, 10
      %s280 = smul.addr %s279, 4
      %s281 = scalar_lea.vmem %s0, %s280
      %s282 = smul.u32 %s19, 10
      %s283 = sadd.s32 %s282, %s20
      %s284 = smul.u32 %s19, 10
      %s285 = sadd.s32 %s284, %s20
      %s286 = sadd.s32 %s285, 1
      %p287 = scmp.lt.s32.totalorder %s286, 19
      %s288 = scalar_select %p287, %s286, 19
      %s289 = smul.addr %s288, 10
      %s290 = smul.addr %s289, 4
      %s291 = scalar_lea.vmem %s1, %s290
      %s292 = smul.u32 %s19, 10
      %s293 = sadd.s32 %s292, %s20
      %s294 = sadd.s32 %s293, 1
      %s295 = smul.u32 %s19, 10
      %s296 = sadd.s32 %s295, %s20
      %s297 = sadd.s32 %s296, 2
      %p298 = scmp.lt.s32.totalorder %s297, 19
      %s299 = scalar_select %p298, %s297, 19
      %s300 = smul.addr %s299, 10
      %s301 = smul.addr %s300, 4
      %s302 = scalar_lea.vmem %s2, %s301
      %s303 = smul.u32 %s19, 10
      %s304 = sadd.s32 %s303, %s20
      %s305 = sadd.s32 %s304, 2
      %p306 = scmp.lt.s32.totalorder %s19, 1
      %s307 = scalar_select %p306, %s19, 1
      %p308 = scmp.lt.s32.totalorder %s20, 7
      %s309 = scalar_select %p308, %s20, 7
      %s310 = smul.addr %s307, 8
      %s311 = sadd.s32 %s309, %s310
      %s312 = smul.addr %s311, 8
      %s313 = scalar_lea.vmem %s4, %s312
      %v315 = vld [vmem:[%s281] sm:$0xf]
      %v316 = vld [vmem:[%s281 + $0x4] sm:$0xf]
      %v317 = vld [vmem:[%s281 + $0x8] sm:$0xf]
      %v318 = vld [vmem:[%s281 + $0xc] sm:$0xf]
      %v319 = vld [vmem:[%s281 + $0x10] sm:$0xf]
      %v320 = vld [vmem:[%s281 + $0x14] sm:$0xf]
      %v321 = vld [vmem:[%s281 + $0x18] sm:$0xf]
      %v322 = vld [vmem:[%s281 + $0x1c] sm:$0xf]
      %v323 = vld [vmem:[%s281 + $0x20] sm:$0xf]
      %v324 = vld [vmem:[%s281 + $0x24] sm:$0xf]
      %v325 = vld [vmem:[%s3] sm:$0xf]
      %s326 = scalar_lea.vmem %s3, 4
      %v327 = vld [vmem:[%s326] sm:$0xf]
      %v336 = vunpack.c.l.b16 %v316
      %v337 = vunpack.c.l.b16 %v317
      %v338 = vunpack.c.l.b16 %v318
      %v339 = vunpack.c.l.b16 %v319
      %v340 = vunpack.c.l.b16 %v320
      %v341 = vunpack.c.l.b16 %v321
      %v342 = vunpack.c.l.b16 %v322
      %v343 = vunpack.c.l.b16 %v323
      %v344 = vpack.c.b16 %v337, %v336
      %v345 = vpack.c.b16 %v339, %v338
      %v346 = vpack.c.b16 %v341, %v340
      %v347 = vpack.c.b16 %v343, %v342
      %vm348 = vcmask 97280
      %v350 = vsel %vm348, %v327, 0
      %v353 = vsel %vm348, %v344, 0
      %v356 = vsel %vm348, %v345, 0
      %v359 = vsel %vm348, %v346, 0
      %v362 = vsel %vm348, %v347, 0
      %364 = vmatprep.subr.bf16.mxu0 0
      %365 = vmatpush1.bf16.xpose.msra.mxu0 0
      %366 = vmatprep.subr.bf16.mxu0 0
      %367 = vmatpush1.bf16.xpose.msra.mxu0 0
      %368 = vmatprep.subr.bf16.mxu0 0
      %369 = vmatpush1.bf16.xpose.msra.mxu0 0
      %370 = vmatprep.subr.bf16.mxu0 0
      %371 = vmatpush1.bf16.xpose.msra.mxu0 0
      %372 = vmatprep.subr.bf16.mxu0 0
      %373 = vmatpush1.bf16.xpose.msra.mxu0 %v362
      %374 = vmatprep.subr.bf16.mxu0 0
      %375 = vmatpush1.bf16.xpose.msra.mxu0 %v359
      %376 = vmatprep.subr.bf16.mxu0 0
      %377 = vmatpush1.bf16.xpose.msra.mxu0 %v356
      %378 = vmatprep.subr.bf16.mxu0 0
      %379 = vmatpush1.bf16.xpose.msra.mxu0 %v353
      %380 = vmatprep.subr.bf16.mxu0 0
      %381 = vmatpush2.bf16.xpose.msra.mxu0 0
      %382 = vmatprep.subr.bf16.mxu0 0
      %383 = vmatpush2.bf16.xpose.msra.mxu0 0
      %384 = vmatprep.subr.bf16.mxu0 0
      %385 = vmatpush2.bf16.xpose.msra.mxu0 0
      %386 = vmatprep.subr.bf16.mxu0 0
      %387 = vmatpush2.bf16.xpose.msra.mxu0 0
      %388 = vmatprep.subr.bf16.mxu0 0
      %389 = vmatpush2.bf16.xpose.msra.mxu0 0
      %390 = vmatprep.subr.bf16.mxu0 0
      %391 = vmatpush2.bf16.xpose.msra.mxu0 0
      %392 = vmatprep.subr.bf16.mxu0 0
      %393 = vmatpush2.bf16.xpose.msra.mxu0 0
      %394 = vmatprep.subr.bf16.mxu0 0
      %395 = vmatpush2.bf16.xpose.msra.mxu0 0
      %396 = vmatprep.mubr.bf16.mxu0 0
      %397 = vmatmul.mubr.bf16.gmra.mxu0 %v350
      %v398 = vpop.f32.mrf.mxu0
      %v399 = vadd.f32 0.0, %v398
      %v400 = vpop.f32.mrf.mxu0
      %v401 = vpop.f32.mrf.mxu0
      %v402 = vpop.f32.mrf.mxu0
      %403 = vdwg.mxu0
      %v405 = vunpack.c.l.b16 %v315
      %v406 = vpack.c.b16 %v336, %v405
      %v407 = vpack.c.b16 %v338, %v337
      %v408 = vpack.c.b16 %v340, %v339
      %v409 = vpack.c.b16 %v342, %v341
      %v411 = vsel %vm348, %v325, 0
      %v414 = vsel %vm348, %v406, 0
      %v417 = vsel %vm348, %v407, 0
      %v420 = vsel %vm348, %v408, 0
      %v423 = vsel %vm348, %v409, 0
      %425 = vmatprep.subr.bf16.mxu0 0
      %426 = vmatpush1.bf16.xpose.msra.mxu0 0
      %427 = vmatprep.subr.bf16.mxu0 0
      %428 = vmatpush1.bf16.xpose.msra.mxu0 0
      %429 = vmatprep.subr.bf16.mxu0 0
      %430 = vmatpush1.bf16.xpose.msra.mxu0 0
      %431 = vmatprep.subr.bf16.mxu0 0
      %432 = vmatpush1.bf16.xpose.msra.mxu0 0
      %433 = vmatprep.subr.bf16.mxu0 0
      %434 = vmatpush1.bf16.xpose.msra.mxu0 %v423
      %435 = vmatprep.subr.bf16.mxu0 0
      %436 = vmatpush1.bf16.xpose.msra.mxu0 %v420
      %437 = vmatprep.subr.bf16.mxu0 0
      %438 = vmatpush1.bf16.xpose.msra.mxu0 %v417
      %439 = vmatprep.subr.bf16.mxu0 0
      %440 = vmatpush1.bf16.xpose.msra.mxu0 %v414
      %441 = vmatprep.subr.bf16.mxu0 0
      %442 = vmatpush2.bf16.xpose.msra.mxu0 0
      %443 = vmatprep.subr.bf16.mxu0 0
      %444 = vmatpush2.bf16.xpose.msra.mxu0 0
      %445 = vmatprep.subr.bf16.mxu0 0
      %446 = vmatpush2.bf16.xpose.msra.mxu0 0
      %447 = vmatprep.subr.bf16.mxu0 0
      %448 = vmatpush2.bf16.xpose.msra.mxu0 0
      %449 = vmatprep.subr.bf16.mxu0 0
      %450 = vmatpush2.bf16.xpose.msra.mxu0 0
      %451 = vmatprep.subr.bf16.mxu0 0
      %452 = vmatpush2.bf16.xpose.msra.mxu0 0
      %453 = vmatprep.subr.bf16.mxu0 0
      %454 = vmatpush2.bf16.xpose.msra.mxu0 0
      %455 = vmatprep.subr.bf16.mxu0 0
      %456 = vmatpush2.bf16.xpose.msra.mxu0 0
      %457 = vmatprep.mubr.bf16.mxu0 0
      %458 = vmatmul.mubr.bf16.gmra.mxu0 %v411
      %v459 = vpop.f32.mrf.mxu0
      %v460 = vadd.f32 %v399, %v459
      %v461 = vpop.f32.mrf.mxu0
      %v462 = vpop.f32.mrf.mxu0
      %v463 = vpop.f32.mrf.mxu0
      %464 = vdwg.mxu0
      %s465 = scalar_lea.vmem %s3, 8
      %v466 = vld [vmem:[%s465] sm:$0xf]
      %v468 = vunpack.c.l.b16 %v324
      %v469 = vpack.c.b16 %v468, %v343
      %v471 = vsel %vm348, %v466, 0
      %v474 = vsel %vm348, %v469, 0
      %476 = vmatprep.subr.bf16.mxu0 0
      %477 = vmatpush1.bf16.xpose.msra.mxu0 0
      %478 = vmatprep.subr.bf16.mxu0 0
      %479 = vmatpush1.bf16.xpose.msra.mxu0 0
      %480 = vmatprep.subr.bf16.mxu0 0
      %481 = vmatpush1.bf16.xpose.msra.mxu0 0
      %482 = vmatprep.subr.bf16.mxu0 0
      %483 = vmatpush1.bf16.xpose.msra.mxu0 0
      %484 = vmatprep.subr.bf16.mxu0 0
      %485 = vmatpush1.bf16.xpose.msra.mxu0 %v474
      %486 = vmatprep.subr.bf16.mxu0 0
      %487 = vmatpush1.bf16.xpose.msra.mxu0 %v423
      %488 = vmatprep.subr.bf16.mxu0 0
      %489 = vmatpush1.bf16.xpose.msra.mxu0 %v420
      %490 = vmatprep.subr.bf16.mxu0 0
      %491 = vmatpush1.bf16.xpose.msra.mxu0 %v417
      %492 = vmatprep.subr.bf16.mxu0 0
      %493 = vmatpush2.bf16.xpose.msra.mxu0 0
      %494 = vmatprep.subr.bf16.mxu0 0
      %495 = vmatpush2.bf16.xpose.msra.mxu0 0
      %496 = vmatprep.subr.bf16.mxu0 0
      %497 = vmatpush2.bf16.xpose.msra.mxu0 0
      %498 = vmatprep.subr.bf16.mxu0 0
      %499 = vmatpush2.bf16.xpose.msra.mxu0 0
      %500 = vmatprep.subr.bf16.mxu0 0
      %501 = vmatpush2.bf16.xpose.msra.mxu0 0
      %502 = vmatprep.subr.bf16.mxu0 0
      %503 = vmatpush2.bf16.xpose.msra.mxu0 0
      %504 = vmatprep.subr.bf16.mxu0 0
      %505 = vmatpush2.bf16.xpose.msra.mxu0 0
      %506 = vmatprep.subr.bf16.mxu0 0
      %507 = vmatpush2.bf16.xpose.msra.mxu0 0
      %508 = vmatprep.mubr.bf16.mxu0 0
      %509 = vmatmul.mubr.bf16.gmra.mxu0 %v471
      %v510 = vpop.f32.mrf.mxu0
      %v511 = vadd.f32 0.0, %v510
      %v512 = vpop.f32.mrf.mxu0
      %v513 = vpop.f32.mrf.mxu0
      %v514 = vpop.f32.mrf.mxu0
      %515 = vdwg.mxu0
      %v516 = vadd.f32 %v460, %v511
      %v517 = vld [vmem:[%s291] sm:$0xf]
      %v518 = vld [vmem:[%s291 + $0x4] sm:$0xf]
      %v519 = vld [vmem:[%s291 + $0x8] sm:$0xf]
      %v520 = vld [vmem:[%s291 + $0xc] sm:$0xf]
      %v521 = vld [vmem:[%s291 + $0x10] sm:$0xf]
      %v522 = vld [vmem:[%s291 + $0x14] sm:$0xf]
      %v523 = vld [vmem:[%s291 + $0x18] sm:$0xf]
      %v524 = vld [vmem:[%s291 + $0x1c] sm:$0xf]
      %v525 = vld [vmem:[%s291 + $0x20] sm:$0xf]
      %v526 = vld [vmem:[%s291 + $0x24] sm:$0xf]
      %s527 = scalar_lea.vmem %s3, 12
      %v528 = vld [vmem:[%s527] sm:$0xf]
      %v537 = vunpack.c.l.b16 %v517
      %v538 = vunpack.c.l.b16 %v518
      %v539 = vunpack.c.l.b16 %v519
      %v540 = vunpack.c.l.b16 %v520
      %v541 = vunpack.c.l.b16 %v521
      %v542 = vunpack.c.l.b16 %v522
      %v543 = vunpack.c.l.b16 %v523
      %v544 = vunpack.c.l.b16 %v524
      %v545 = vpack.c.b16 %v538, %v537
      %v546 = vpack.c.b16 %v540, %v539
      %v547 = vpack.c.b16 %v542, %v541
      %v548 = vpack.c.b16 %v544, %v543
      %v550 = vsel %vm348, %v528, 0
      %v553 = vsel %vm348, %v545, 0
      %v556 = vsel %vm348, %v546, 0
      %v559 = vsel %vm348, %v547, 0
      %v562 = vsel %vm348, %v548, 0
      %564 = vmatprep.subr.bf16.mxu0 0
      %565 = vmatpush1.bf16.xpose.msra.mxu0 0
      %566 = vmatprep.subr.bf16.mxu0 0
      %567 = vmatpush1.bf16.xpose.msra.mxu0 0
      %568 = vmatprep.subr.bf16.mxu0 0
      %569 = vmatpush1.bf16.xpose.msra.mxu0 0
      %570 = vmatprep.subr.bf16.mxu0 0
      %571 = vmatpush1.bf16.xpose.msra.mxu0 0
      %572 = vmatprep.subr.bf16.mxu0 0
      %573 = vmatpush1.bf16.xpose.msra.mxu0 %v562
      %574 = vmatprep.subr.bf16.mxu0 0
      %575 = vmatpush1.bf16.xpose.msra.mxu0 %v559
      %576 = vmatprep.subr.bf16.mxu0 0
      %577 = vmatpush1.bf16.xpose.msra.mxu0 %v556
      %578 = vmatprep.subr.bf16.mxu0 0
      %579 = vmatpush1.bf16.xpose.msra.mxu0 %v553
      %580 = vmatprep.subr.bf16.mxu0 0
      %581 = vmatpush2.bf16.xpose.msra.mxu0 0
      %582 = vmatprep.subr.bf16.mxu0 0
      %583 = vmatpush2.bf16.xpose.msra.mxu0 0
      %584 = vmatprep.subr.bf16.mxu0 0
      %585 = vmatpush2.bf16.xpose.msra.mxu0 0
      %586 = vmatprep.subr.bf16.mxu0 0
      %587 = vmatpush2.bf16.xpose.msra.mxu0 0
      %588 = vmatprep.subr.bf16.mxu0 0
      %589 = vmatpush2.bf16.xpose.msra.mxu0 0
      %590 = vmatprep.subr.bf16.mxu0 0
      %591 = vmatpush2.bf16.xpose.msra.mxu0 0
      %592 = vmatprep.subr.bf16.mxu0 0
      %593 = vmatpush2.bf16.xpose.msra.mxu0 0
      %594 = vmatprep.subr.bf16.mxu0 0
      %595 = vmatpush2.bf16.xpose.msra.mxu0 0
      %596 = vmatprep.mubr.bf16.mxu0 0
      %597 = vmatmul.mubr.bf16.gmra.mxu0 %v550
      %v598 = vpop.f32.mrf.mxu0
      %v599 = vadd.f32 0.0, %v598
      %v600 = vpop.f32.mrf.mxu0
      %v601 = vpop.f32.mrf.mxu0
      %v602 = vpop.f32.mrf.mxu0
      %603 = vdwg.mxu0
      %v604 = vadd.f32 %v516, %v599
      %s605 = scalar_lea.vmem %s3, 16
      %v606 = vld [vmem:[%s605] sm:$0xf]
      %v608 = vunpack.c.l.b16 %v525
      %v609 = vpack.c.b16 %v539, %v538
      %v610 = vpack.c.b16 %v541, %v540
      %v611 = vpack.c.b16 %v543, %v542
      %v612 = vpack.c.b16 %v608, %v544
      %v614 = vsel %vm348, %v606, 0
      %v617 = vsel %vm348, %v609, 0
      %v620 = vsel %vm348, %v610, 0
      %v623 = vsel %vm348, %v611, 0
      %v626 = vsel %vm348, %v612, 0
      %628 = vmatprep.subr.bf16.mxu0 0
      %629 = vmatpush1.bf16.xpose.msra.mxu0 0
      %630 = vmatprep.subr.bf16.mxu0 0
      %631 = vmatpush1.bf16.xpose.msra.mxu0 0
      %632 = vmatprep.subr.bf16.mxu0 0
      %633 = vmatpush1.bf16.xpose.msra.mxu0 0
      %634 = vmatprep.subr.bf16.mxu0 0
      %635 = vmatpush1.bf16.xpose.msra.mxu0 0
      %636 = vmatprep.subr.bf16.mxu0 0
      %637 = vmatpush1.bf16.xpose.msra.mxu0 %v626
      %638 = vmatprep.subr.bf16.mxu0 0
      %639 = vmatpush1.bf16.xpose.msra.mxu0 %v623
      %640 = vmatprep.subr.bf16.mxu0 0
      %641 = vmatpush1.bf16.xpose.msra.mxu0 %v620
      %642 = vmatprep.subr.bf16.mxu0 0
      %643 = vmatpush1.bf16.xpose.msra.mxu0 %v617
      %644 = vmatprep.subr.bf16.mxu0 0
      %645 = vmatpush2.bf16.xpose.msra.mxu0 0
      %646 = vmatprep.subr.bf16.mxu0 0
      %647 = vmatpush2.bf16.xpose.msra.mxu0 0
      %648 = vmatprep.subr.bf16.mxu0 0
      %649 = vmatpush2.bf16.xpose.msra.mxu0 0
      %650 = vmatprep.subr.bf16.mxu0 0
      %651 = vmatpush2.bf16.xpose.msra.mxu0 0
      %652 = vmatprep.subr.bf16.mxu0 0
      %653 = vmatpush2.bf16.xpose.msra.mxu0 0
      %654 = vmatprep.subr.bf16.mxu0 0
      %655 = vmatpush2.bf16.xpose.msra.mxu0 0
      %656 = vmatprep.subr.bf16.mxu0 0
      %657 = vmatpush2.bf16.xpose.msra.mxu0 0
      %658 = vmatprep.subr.bf16.mxu0 0
      %659 = vmatpush2.bf16.xpose.msra.mxu0 0
      %660 = vmatprep.mubr.bf16.mxu0 0
      %661 = vmatmul.mubr.bf16.gmra.mxu0 %v614
      %v662 = vpop.f32.mrf.mxu0
      %v663 = vadd.f32 0.0, %v662
      %v664 = vpop.f32.mrf.mxu0
      %v665 = vpop.f32.mrf.mxu0
      %v666 = vpop.f32.mrf.mxu0
      %667 = vdwg.mxu0
      %v668 = vadd.f32 %v604, %v663
      %s669 = scalar_lea.vmem %s3, 20
      %v670 = vld [vmem:[%s669] sm:$0xf]
      %v672 = vunpack.c.l.b16 %v526
      %v673 = vpack.c.b16 %v672, %v608
      %v675 = vsel %vm348, %v670, 0
      %v678 = vsel %vm348, %v673, 0
      %680 = vmatprep.subr.bf16.mxu0 0
      %681 = vmatpush1.bf16.xpose.msra.mxu0 0
      %682 = vmatprep.subr.bf16.mxu0 0
      %683 = vmatpush1.bf16.xpose.msra.mxu0 0
      %684 = vmatprep.subr.bf16.mxu0 0
      %685 = vmatpush1.bf16.xpose.msra.mxu0 0
      %686 = vmatprep.subr.bf16.mxu0 0
      %687 = vmatpush1.bf16.xpose.msra.mxu0 0
      %688 = vmatprep.subr.bf16.mxu0 0
      %689 = vmatpush1.bf16.xpose.msra.mxu0 %v678
      %690 = vmatprep.subr.bf16.mxu0 0
      %691 = vmatpush1.bf16.xpose.msra.mxu0 %v562
      %692 = vmatprep.subr.bf16.mxu0 0
      %693 = vmatpush1.bf16.xpose.msra.mxu0 %v559
      %694 = vmatprep.subr.bf16.mxu0 0
      %695 = vmatpush1.bf16.xpose.msra.mxu0 %v556
      %696 = vmatprep.subr.bf16.mxu0 0
      %697 = vmatpush2.bf16.xpose.msra.mxu0 0
      %698 = vmatprep.subr.bf16.mxu0 0
      %699 = vmatpush2.bf16.xpose.msra.mxu0 0
      %700 = vmatprep.subr.bf16.mxu0 0
      %701 = vmatpush2.bf16.xpose.msra.mxu0 0
      %702 = vmatprep.subr.bf16.mxu0 0
      %703 = vmatpush2.bf16.xpose.msra.mxu0 0
      %704 = vmatprep.subr.bf16.mxu0 0
      %705 = vmatpush2.bf16.xpose.msra.mxu0 0
      %706 = vmatprep.subr.bf16.mxu0 0
      %707 = vmatpush2.bf16.xpose.msra.mxu0 0
      %708 = vmatprep.subr.bf16.mxu0 0
      %709 = vmatpush2.bf16.xpose.msra.mxu0 0
      %710 = vmatprep.subr.bf16.mxu0 0
      %711 = vmatpush2.bf16.xpose.msra.mxu0 0
      %712 = vmatprep.mubr.bf16.mxu0 0
      %713 = vmatmul.mubr.bf16.gmra.mxu0 %v675
      %v714 = vpop.f32.mrf.mxu0
      %v715 = vadd.f32 0.0, %v714
      %v716 = vpop.f32.mrf.mxu0
      %v717 = vpop.f32.mrf.mxu0
      %v718 = vpop.f32.mrf.mxu0
      %719 = vdwg.mxu0
      %v720 = vadd.f32 %v668, %v715
      %v721 = vld [vmem:[%s302] sm:$0xf]
      %v722 = vld [vmem:[%s302 + $0x4] sm:$0xf]
      %v723 = vld [vmem:[%s302 + $0x8] sm:$0xf]
      %v724 = vld [vmem:[%s302 + $0xc] sm:$0xf]
      %v725 = vld [vmem:[%s302 + $0x10] sm:$0xf]
      %v726 = vld [vmem:[%s302 + $0x14] sm:$0xf]
      %v727 = vld [vmem:[%s302 + $0x18] sm:$0xf]
      %v728 = vld [vmem:[%s302 + $0x1c] sm:$0xf]
      %v729 = vld [vmem:[%s302 + $0x20] sm:$0xf]
      %v730 = vld [vmem:[%s302 + $0x24] sm:$0xf]
      %s731 = scalar_lea.vmem %s3, 24
      %v732 = vld [vmem:[%s731] sm:$0xf]
      %v741 = vunpack.c.l.b16 %v721
      %v742 = vunpack.c.l.b16 %v722
      %v743 = vunpack.c.l.b16 %v723
      %v744 = vunpack.c.l.b16 %v724
      %v745 = vunpack.c.l.b16 %v725
      %v746 = vunpack.c.l.b16 %v726
      %v747 = vunpack.c.l.b16 %v727
      %v748 = vunpack.c.l.b16 %v728
      %v749 = vpack.c.b16 %v742, %v741
      %v750 = vpack.c.b16 %v744, %v743
      %v751 = vpack.c.b16 %v746, %v745
      %v752 = vpack.c.b16 %v748, %v747
      %v754 = vsel %vm348, %v732, 0
      %v757 = vsel %vm348, %v749, 0
      %v760 = vsel %vm348, %v750, 0
      %v763 = vsel %vm348, %v751, 0
      %v766 = vsel %vm348, %v752, 0
      %768 = vmatprep.subr.bf16.mxu0 0
      %769 = vmatpush1.bf16.xpose.msra.mxu0 0
      %770 = vmatprep.subr.bf16.mxu0 0
      %771 = vmatpush1.bf16.xpose.msra.mxu0 0
      %772 = vmatprep.subr.bf16.mxu0 0
      %773 = vmatpush1.bf16.xpose.msra.mxu0 0
      %774 = vmatprep.subr.bf16.mxu0 0
      %775 = vmatpush1.bf16.xpose.msra.mxu0 0
      %776 = vmatprep.subr.bf16.mxu0 0
      %777 = vmatpush1.bf16.xpose.msra.mxu0 %v766
      %778 = vmatprep.subr.bf16.mxu0 0
      %779 = vmatpush1.bf16.xpose.msra.mxu0 %v763
      %780 = vmatprep.subr.bf16.mxu0 0
      %781 = vmatpush1.bf16.xpose.msra.mxu0 %v760
      %782 = vmatprep.subr.bf16.mxu0 0
      %783 = vmatpush1.bf16.xpose.msra.mxu0 %v757
      %784 = vmatprep.subr.bf16.mxu0 0
      %785 = vmatpush2.bf16.xpose.msra.mxu0 0
      %786 = vmatprep.subr.bf16.mxu0 0
      %787 = vmatpush2.bf16.xpose.msra.mxu0 0
      %788 = vmatprep.subr.bf16.mxu0 0
      %789 = vmatpush2.bf16.xpose.msra.mxu0 0
      %790 = vmatprep.subr.bf16.mxu0 0
      %791 = vmatpush2.bf16.xpose.msra.mxu0 0
      %792 = vmatprep.subr.bf16.mxu0 0
      %793 = vmatpush2.bf16.xpose.msra.mxu0 0
      %794 = vmatprep.subr.bf16.mxu0 0
      %795 = vmatpush2.bf16.xpose.msra.mxu0 0
      %796 = vmatprep.subr.bf16.mxu0 0
      %797 = vmatpush2.bf16.xpose.msra.mxu0 0
      %798 = vmatprep.subr.bf16.mxu0 0
      %799 = vmatpush2.bf16.xpose.msra.mxu0 0
      %800 = vmatprep.mubr.bf16.mxu0 0
      %801 = vmatmul.mubr.bf16.gmra.mxu0 %v754
      %v802 = vpop.f32.mrf.mxu0
      %v803 = vadd.f32 0.0, %v802
      %v804 = vpop.f32.mrf.mxu0
      %v805 = vpop.f32.mrf.mxu0
      %v806 = vpop.f32.mrf.mxu0
      %807 = vdwg.mxu0
      %v808 = vadd.f32 %v720, %v803
      %s809 = scalar_lea.vmem %s3, 28
      %v810 = vld [vmem:[%s809] sm:$0xf]
      %v812 = vunpack.c.l.b16 %v729
      %v813 = vpack.c.b16 %v743, %v742
      %v814 = vpack.c.b16 %v745, %v744
      %v815 = vpack.c.b16 %v747, %v746
      %v816 = vpack.c.b16 %v812, %v748
      %v818 = vsel %vm348, %v810, 0
      %v821 = vsel %vm348, %v813, 0
      %v824 = vsel %vm348, %v814, 0
      %v827 = vsel %vm348, %v815, 0
      %v830 = vsel %vm348, %v816, 0
      %832 = vmatprep.subr.bf16.mxu0 0
      %833 = vmatpush1.bf16.xpose.msra.mxu0 0
      %834 = vmatprep.subr.bf16.mxu0 0
      %835 = vmatpush1.bf16.xpose.msra.mxu0 0
      %836 = vmatprep.subr.bf16.mxu0 0
      %837 = vmatpush1.bf16.xpose.msra.mxu0 0
      %838 = vmatprep.subr.bf16.mxu0 0
      %839 = vmatpush1.bf16.xpose.msra.mxu0 0
      %840 = vmatprep.subr.bf16.mxu0 0
      %841 = vmatpush1.bf16.xpose.msra.mxu0 %v830
      %842 = vmatprep.subr.bf16.mxu0 0
      %843 = vmatpush1.bf16.xpose.msra.mxu0 %v827
      %844 = vmatprep.subr.bf16.mxu0 0
      %845 = vmatpush1.bf16.xpose.msra.mxu0 %v824
      %846 = vmatprep.subr.bf16.mxu0 0
      %847 = vmatpush1.bf16.xpose.msra.mxu0 %v821
      %848 = vmatprep.subr.bf16.mxu0 0
      %849 = vmatpush2.bf16.xpose.msra.mxu0 0
      %850 = vmatprep.subr.bf16.mxu0 0
      %851 = vmatpush2.bf16.xpose.msra.mxu0 0
      %852 = vmatprep.subr.bf16.mxu0 0
      %853 = vmatpush2.bf16.xpose.msra.mxu0 0
      %854 = vmatprep.subr.bf16.mxu0 0
      %855 = vmatpush2.bf16.xpose.msra.mxu0 0
      %856 = vmatprep.subr.bf16.mxu0 0
      %857 = vmatpush2.bf16.xpose.msra.mxu0 0
      %858 = vmatprep.subr.bf16.mxu0 0
      %859 = vmatpush2.bf16.xpose.msra.mxu0 0
      %860 = vmatprep.subr.bf16.mxu0 0
      %861 = vmatpush2.bf16.xpose.msra.mxu0 0
      %862 = vmatprep.subr.bf16.mxu0 0
      %863 = vmatpush2.bf16.xpose.msra.mxu0 0
      %864 = vmatprep.mubr.bf16.mxu0 0
      %865 = vmatmul.mubr.bf16.gmra.mxu0 %v818
      %v866 = vpop.f32.mrf.mxu0
      %v867 = vadd.f32 0.0, %v866
      %v868 = vpop.f32.mrf.mxu0
      %v869 = vpop.f32.mrf.mxu0
      %v870 = vpop.f32.mrf.mxu0
      %871 = vdwg.mxu0
      %v872 = vadd.f32 %v808, %v867
      %s873 = scalar_lea.vmem %s3, 32
      %v874 = vld [vmem:[%s873] sm:$0xf]
      %v876 = vunpack.c.l.b16 %v730
      %v877 = vpack.c.b16 %v876, %v812
      %v879 = vsel %vm348, %v874, 0
      %v882 = vsel %vm348, %v877, 0
      %884 = vmatprep.subr.bf16.mxu0 0
      %885 = vmatpush1.bf16.xpose.msra.mxu0 0
      %886 = vmatprep.subr.bf16.mxu0 0
      %887 = vmatpush1.bf16.xpose.msra.mxu0 0
      %888 = vmatprep.subr.bf16.mxu0 0
      %889 = vmatpush1.bf16.xpose.msra.mxu0 0
      %890 = vmatprep.subr.bf16.mxu0 0
      %891 = vmatpush1.bf16.xpose.msra.mxu0 0
      %892 = vmatprep.subr.bf16.mxu0 0
      %893 = vmatpush1.bf16.xpose.msra.mxu0 %v882
      %894 = vmatprep.subr.bf16.mxu0 0
      %895 = vmatpush1.bf16.xpose.msra.mxu0 %v766
      %896 = vmatprep.subr.bf16.mxu0 0
      %897 = vmatpush1.bf16.xpose.msra.mxu0 %v763
      %898 = vmatprep.subr.bf16.mxu0 0
      %899 = vmatpush1.bf16.xpose.msra.mxu0 %v760
      %900 = vmatprep.subr.bf16.mxu0 0
      %901 = vmatpush2.bf16.xpose.msra.mxu0 0
      %902 = vmatprep.subr.bf16.mxu0 0
      %903 = vmatpush2.bf16.xpose.msra.mxu0 0
      %904 = vmatprep.subr.bf16.mxu0 0
      %905 = vmatpush2.bf16.xpose.msra.mxu0 0
      %906 = vmatprep.subr.bf16.mxu0 0
      %907 = vmatpush2.bf16.xpose.msra.mxu0 0
      %908 = vmatprep.subr.bf16.mxu0 0
      %909 = vmatpush2.bf16.xpose.msra.mxu0 0
      %910 = vmatprep.subr.bf16.mxu0 0
      %911 = vmatpush2.bf16.xpose.msra.mxu0 0
      %912 = vmatprep.subr.bf16.mxu0 0
      %913 = vmatpush2.bf16.xpose.msra.mxu0 0
      %914 = vmatprep.subr.bf16.mxu0 0
      %915 = vmatpush2.bf16.xpose.msra.mxu0 0
      %916 = vmatprep.mubr.bf16.mxu0 0
      %917 = vmatmul.mubr.bf16.gmra.mxu0 %v879
      %v918 = vpop.f32.mrf.mxu0
      %v919 = vadd.f32 0.0, %v918
      %v920 = vpop.f32.mrf.mxu0
      %v921 = vpop.f32.mrf.mxu0
      %v922 = vpop.f32.mrf.mxu0
      %923 = vdwg.mxu0
      %v924 = vadd.f32 %v872, %v919
      %vm925 = vcmask 523264
      %v926 = vsel %vm925, %v924, 0.0
      %927 = vadd.xlane.f32.xlu0 %v926
      %v928 = vpop.xlane.xlu0 %927
      %v929 = vmul.f32 %v924, %v924
      %v930 = vsel %vm925, %v929, 0.0
      %931 = vadd.xlane.f32.xlu0 %v930
      %v932 = vpop.xlane.xlu0 %931
      %vm933 = vcmask 7168
      %934 = vst.msk [vmem:[%s313] sm:$0xff] %vm933, %v928
      %vm935 = vcmask 15368
      %936 = vst.msk [vmem:[%s313] sm:$0xff] %vm935, %v932
      %p937 = scmp.lt.s32.totalorder %s19, 1
      %s938 = scalar_select %p937, %s19, 1
      %p939 = scmp.lt.s32.totalorder %s20, 7
      %s940 = scalar_select %p939, %s20, 7
      %s941 = smul.addr %s938, 8
      %s942 = sadd.s32 %s940, %s941
      %s943 = smul.addr %s942, 8
      %s944 = scalar_lea.vmem %s4, %s943
      // Predicated region
      $region37: #{conv3d_block_forward.2} parent=35 // pred_check
        %p945 = pneg %p162
      $region38: #{conv3d_block_forward.2} parent=35 // pred_check_branch
        %947 = sbr.rel (%p945) target = $region40
      $region39: #{conv3d_block_forward.2} parent=35 // pred_region
        _
      $region40: #{conv3d_block_forward.2} parent=35 // pred_fallthru
        _
    $region36: #{conv3d_block_forward.2} parent=5 // pred_fallthru
      _
    %p948 = scmp.le.s32.totalorder 2, %s10
    // Predicated region
    $region41: #{conv3d_block_forward.2} parent=5 // pred_check
      %p949 = pneg %p948
    $region42: #{conv3d_block_forward.2} parent=5 // pred_check_branch
      %951 = sbr.rel (%p949) target = $region44
    $region43: #{conv3d_block_forward.2} parent=5 // pred_region
      %s952 = ssub.s32 %s10, 2
      // Predicated region
      $region45: #{conv3d_block_forward.2} parent=43 // pred_check
        %p953 = pneg %p168
      $region46: #{conv3d_block_forward.2} parent=43 // pred_check_branch
        %955 = sbr.rel (%p953) target = $region48
      $region47: #{conv3d_block_forward.2} parent=43 // pred_region
        %p956 = scmp.lt.s32.totalorder %s21, 1
        %s957 = scalar_select %p956, %s21, 1
        %p958 = scmp.lt.s32.totalorder %s22, 7
        %s959 = scalar_select %p958, %s22, 7
        %s960 = smul.addr %s957, 8
        %s961 = sadd.s32 %s959, %s960
        %s962 = smul.addr %s961, 8
        %s963 = scalar_lea.vmem %s4, %s962
      $region48: #{conv3d_block_forward.2} parent=43 // pred_fallthru
        _
    $region44: #{conv3d_block_forward.2} parent=5 // pred_fallthru
      _
  $region6: #{conv3d_block_forward.2} parent=0 // loop_footer
    %s14 = sadd.s32 1, %s10
  $region7: #{conv3d_block_forward.2} parent=0 // loop_footer_branch
    %9 = sbr.rel target = $region3
  $region8: #{conv3d_block_forward.2} parent=0 // loop_exit
    _

// kernel: conv3d_block_forward.3
$region0: #{conv3d_block_forward.3}
  #allocation0 [shape = 'u32[]', space=smem, size = 0x4, offset = 0x4, fixed_abs, tag = 'smem constant byte address 0x4 - core index']
  #allocation1 [shape = 'u32[144,128]{1,0:T(1,128)}', space=vmem, size = 0x12000, scoped, tag = 'internal scratch']
  %s0 = inlined_call_operand.vmem [shape: bf16[20,80,12], index: 0, kind: input, shape index: {}, may-alias: {0,1,2}]
  %s1 = inlined_call_operand.vmem [shape: bf16[20,80,12], index: 1, kind: input, shape index: {}, may-alias: {0,1,2}]
  %s2 = inlined_call_operand.vmem [shape: bf16[20,80,12], index: 2, kind: input, shape index: {}, may-alias: {0,1,2}]
  %s3 = inlined_call_operand.vmem [shape: bf16[9,8,12], index: 3, kind: input, shape index: {}]
  %s4 = inlined_call_operand.vmem [shape: f32[8,1], index: 4, kind: input, shape index: {}]
  %s5 = inlined_call_operand.vmem [shape: f32[8,1], index: 5, kind: input, shape index: {}]
  %s6 = inlined_call_operand.vmem [shape: f32[2,8,8,64], index: 6, kind: output, shape index: {}]
  %s7 = sld [smem:[#allocation0]]
  $region57: #{conv3d_block_forward.3} parent=0
    _
  %s9 = ssub.s32 1, %s7
  %s10 = scalar_select 0, %s9, %s7
  loop: start=0, step=1, limit=18
  $region2: #{conv3d_block_forward.3} parent=0 // loop_pre_header
    _
  $region3: #{conv3d_block_forward.3} parent=0 // loop_header
    %s12 = sphi 0, %s16
    %p13 = scmp.ge.s32.totalorder %s12, 18
    %s19 = sphi 0, %s31
    %s20 = sphi 0, %s27
    %s21 = sphi 0, %s19
    %s22 = sphi 0, %s20
    %s23 = sphi 0, %s21
    %s24 = sphi 0, %s22
    %s38 = sphi 0, %s40
    %s41 = sphi 0, %s38
    %s42 = sphi 0, %s41
    %s58 = sphi 0, %s42
    %s70 = sphi 0, %s72
    %s73 = sphi 0, %s70
    %s74 = sphi 0, %s73
    %s90 = sphi 0, %s74
    %s102 = sphi 0, %s104
    %s105 = sphi 0, %s102
    %s106 = sphi 0, %s105
    %s122 = sphi 0, %s106
    %s126 = sphi 0, %s126
    %s128 = sphi 0, %s126
    %s129 = sphi 0, %s128
    %s143 = sphi 0, %s129
    %s147 = sphi 0, %s147
    %s149 = sphi 0, %s147
    %s150 = sphi 0, %s149
    %s164 = sphi 0, %s150
    %s168 = sphi 0, %s168
    %s170 = sphi 0, %s168
    %s171 = sphi 0, %s170
    %s185 = sphi 0, %s171
    %s193 = sphi 0, %s195
    %s196 = sphi 0, %s193
    %s197 = sphi 0, %s196
    %s213 = sphi 0, %s197
  $region4: #{conv3d_block_forward.3} parent=0 // loop_header_branch
    %15 = sbr.rel (%p13) target = $region8
  $region5: #{conv3d_block_forward.3} parent=0 // loop_body
    %s17 = ssub.s32 %s12, 1
    %s18 = ssub.s32 %s12, 2
    %s25 = sadd.s32 1, %s20
    %p26 = scmp.ge.s32.totalorder %s25, 8
    %s27 = scalar_select %p26, 0, %s25
    %s28 = sadd.s32 1, %s19
    %s29 = scalar_select %p26, %s28, %s19
    %p30 = scmp.ge.s32.totalorder %s29, 2
    %s31 = scalar_select %p30, 0, %s29
    %s32 = smul.u32 %s19, 10
    %s33 = sadd.s32 %s32, %s20
    %s34 = smul.u32 %s31, 10
    %s35 = sadd.s32 %s34, %s27
    %s36 = ssub.s32 %s33, %s35
    %p37 = scmp.eq.s32.totalorder %s36, 0
    %s39 = sadd.s32 %s38, 1
    %s40 = scalar_select %p37, %s38, %s39
    %p43 = pneg %p37
    %p44 = scmp.eq.s32.totalorder %s12, 15
    %p45 = por %p43, %p44
    %p46 = scmp.ne.s32.totalorder %s38, %s41
    %p47 = scmp.eq.s32.totalorder %s12, 0
    %p48 = por %p46, %p47
    %p49 = scmp.ne.s32.totalorder %s38, %s41
    %p50 = scmp.eq.s32.totalorder %s17, 15
    %p51 = por %p49, %p50
    %p52 = scmp.ne.s32.totalorder %s41, %s42
    %p53 = scmp.eq.s32.totalorder %s17, 0
    %p54 = por %p52, %p53
    %p55 = scmp.ne.s32.totalorder %s41, %s42
    %p56 = scmp.eq.s32.totalorder %s18, 15
    %p57 = por %p55, %p56
    %p59 = scmp.ne.s32.totalorder %s42, %s58
    %p60 = scmp.eq.s32.totalorder %s18, 0
    %p61 = por %p59, %p60
    %s62 = smul.u32 %s19, 10
    %s63 = sadd.s32 %s62, %s20
    %s64 = sadd.s32 %s63, 1
    %s65 = smul.u32 %s31, 10
    %s66 = sadd.s32 %s65, %s27
    %s67 = sadd.s32 %s66, 1
    %s68 = ssub.s32 %s64, %s67
    %p69 = scmp.eq.s32.totalorder %s68, 0
    %s71 = sadd.s32 %s70, 1
    %s72 = scalar_select %p69, %s70, %s71
    %p75 = pneg %p69
    %p76 = scmp.eq.s32.totalorder %s12, 15
    %p77 = por %p75, %p76
    %p78 = scmp.ne.s32.totalorder %s70, %s73
    %p79 = scmp.eq.s32.totalorder %s12, 0
    %p80 = por %p78, %p79
    %p81 = scmp.ne.s32.totalorder %s70, %s73
    %p82 = scmp.eq.s32.totalorder %s17, 15
    %p83 = por %p81, %p82
    %p84 = scmp.ne.s32.totalorder %s73, %s74
    %p85 = scmp.eq.s32.totalorder %s17, 0
    %p86 = por %p84, %p85
    %p87 = scmp.ne.s32.totalorder %s73, %s74
    %p88 = scmp.eq.s32.totalorder %s18, 15
    %p89 = por %p87, %p88
    %p91 = scmp.ne.s32.totalorder %s74, %s90
    %p92 = scmp.eq.s32.totalorder %s18, 0
    %p93 = por %p91, %p92
    %s94 = smul.u32 %s19, 10
    %s95 = sadd.s32 %s94, %s20
    %s96 = sadd.s32 %s95, 2
    %s97 = smul.u32 %s31, 10
    %s98 = sadd.s32 %s97, %s27
    %s99 = sadd.s32 %s98, 2
    %s100 = ssub.s32 %s96, %s99
    %p101 = scmp.eq.s32.totalorder %s100, 0
    %s103 = sadd.s32 %s102, 1
    %s104 = scalar_select %p101, %s102, %s103
    %p107 = pneg %p101
    %p108 = scmp.eq.s32.totalorder %s12, 15
    %p109 = por %p107, %p108
    %p110 = scmp.ne.s32.totalorder %s102, %s105
    %p111 = scmp.eq.s32.totalorder %s12, 0
    %p112 = por %p110, %p111
    %p113 = scmp.ne.s32.totalorder %s102, %s105
    %p114 = scmp.eq.s32.totalorder %s17, 15
    %p115 = por %p113, %p114
    %p116 = scmp.ne.s32.totalorder %s105, %s106
    %p117 = scmp.eq.s32.totalorder %s17, 0
    %p118 = por %p116, %p117
    %p119 = scmp.ne.s32.totalorder %s105, %s106
    %p120 = scmp.eq.s32.totalorder %s18, 15
    %p121 = por %p119, %p120
    %p123 = scmp.ne.s32.totalorder %s106, %s122
    %p124 = scmp.eq.s32.totalorder %s18, 0
    %p125 = por %p123, %p124
    %s127 = sadd.s32 %s126, 1
    %p130 = scmp.eq.s32.totalorder %s12, 15
    %p131 = scmp.ne.s32.totalorder %s126, %s128
    %p132 = scmp.eq.s32.totalorder %s12, 0
    %p133 = por %p131, %p132
    %p134 = scmp.ne.s32.totalorder %s126, %s128
    %p135 = scmp.eq.s32.totalorder %s17, 15
    %p136 = por %p134, %p135
    %p137 = scmp.ne.s32.totalorder %s128, %s129
    %p138 = scmp.eq.s32.totalorder %s17, 0
    %p139 = por %p137, %p138
    %p140 = scmp.ne.s32.totalorder %s128, %s129
    %p141 = scmp.eq.s32.totalorder %s18, 15
    %p142 = por %p140, %p141
    %p144 = scmp.ne.s32.totalorder %s129, %s143
    %p145 = scmp.eq.s32.totalorder %s18, 0
    %p146 = por %p144, %p145
    %s148 = sadd.s32 %s147, 1
    %p151 = scmp.eq.s32.totalorder %s12, 15
    %p152 = scmp.ne.s32.totalorder %s147, %s149
    %p153 = scmp.eq.s32.totalorder %s12, 0
    %p154 = por %p152, %p153
    %p155 = scmp.ne.s32.totalorder %s147, %s149
    %p156 = scmp.eq.s32.totalorder %s17, 15
    %p157 = por %p155, %p156
    %p158 = scmp.ne.s32.totalorder %s149, %s150
    %p159 = scmp.eq.s32.totalorder %s17, 0
    %p160 = por %p158, %p159
    %p161 = scmp.ne.s32.totalorder %s149, %s150
    %p162 = scmp.eq.s32.totalorder %s18, 15
    %p163 = por %p161, %p162
    %p165 = scmp.ne.s32.totalorder %s150, %s164
    %p166 = scmp.eq.s32.totalorder %s18, 0
    %p167 = por %p165, %p166
    %s169 = sadd.s32 %s168, 1
    %p172 = scmp.eq.s32.totalorder %s12, 15
    %p173 = scmp.ne.s32.totalorder %s168, %s170
    %p174 = scmp.eq.s32.totalorder %s12, 0
    %p175 = por %p173, %p174
    %p176 = scmp.ne.s32.totalorder %s168, %s170
    %p177 = scmp.eq.s32.totalorder %s17, 15
    %p178 = por %p176, %p177
    %p179 = scmp.ne.s32.totalorder %s170, %s171
    %p180 = scmp.eq.s32.totalorder %s17, 0
    %p181 = por %p179, %p180
    %p182 = scmp.ne.s32.totalorder %s170, %s171
    %p183 = scmp.eq.s32.totalorder %s18, 15
    %p184 = por %p182, %p183
    %p186 = scmp.ne.s32.totalorder %s171, %s185
    %p187 = scmp.eq.s32.totalorder %s18, 0
    %p188 = por %p186, %p187
    %s189 = ssub.s32 %s19, %s31
    %s190 = ssub.s32 %s20, %s27
    %s191 = sor.u32 %s189, %s190
    %p192 = scmp.eq.s32.totalorder %s191, 0
    %s194 = sadd.s32 %s193, 1
    %s195 = scalar_select %p192, %s193, %s194
    %p198 = pneg %p192
    %p199 = scmp.eq.s32.totalorder %s12, 15
    %p200 = por %p198, %p199
    %p201 = scmp.ne.s32.totalorder %s193, %s196
    %p202 = scmp.eq.s32.totalorder %s12, 0
    %p203 = por %p201, %p202
    %p204 = scmp.ne.s32.totalorder %s193, %s196
    %p205 = scmp.eq.s32.totalorder %s17, 15
    %p206 = por %p204, %p205
    %p207 = scmp.ne.s32.totalorder %s196, %s197
    %p208 = scmp.eq.s32.totalorder %s17, 0
    %p209 = por %p207, %p208
    %p210 = scmp.ne.s32.totalorder %s196, %s197
    %p211 = scmp.eq.s32.totalorder %s18, 15
    %p212 = por %p210, %p211
    %p214 = scmp.ne.s32.totalorder %s197, %s213
    %p215 = scmp.eq.s32.totalorder %s18, 0
    %p216 = por %p214, %p215
    %p217 = scmp.le.s32.totalorder 1, %s12
    %p218 = scmp.lt.s32.totalorder %s12, 17
    %p219 = pnand %p217, %p218
    %p220 = pneg %p219
    // Predicated region
    $region9: #{conv3d_block_forward.3} parent=5 // pred_check
      _
    $region10: #{conv3d_block_forward.3} parent=5 // pred_check_branch
      %222 = sbr.rel (%p219) target = $region12
    $region11: #{conv3d_block_forward.3} parent=5 // pred_region
      %s223 = ssub.s32 %s12, 1
      // Predicated region
      $region13: #{conv3d_block_forward.3} parent=11 // pred_check
        %p224 = pneg %p139
      $region14: #{conv3d_block_forward.3} parent=11 // pred_check_branch
        %226 = sbr.rel (%p224) target = $region16
      $region15: #{conv3d_block_forward.3} parent=11 // pred_region
        _
      $region16: #{conv3d_block_forward.3} parent=11 // pred_fallthru
        _
      // Predicated region
      $region17: #{conv3d_block_forward.3} parent=11 // pred_check
        %p227 = pneg %p160
      $region18: #{conv3d_block_forward.3} parent=11 // pred_check_branch
        %229 = sbr.rel (%p227) target = $region20
      $region19: #{conv3d_block_forward.3} parent=11 // pred_region
        _
      $region20: #{conv3d_block_forward.3} parent=11 // pred_fallthru
        _
      // Predicated region
      $region21: #{conv3d_block_forward.3} parent=11 // pred_check
        %p230 = pneg %p181
      $region22: #{conv3d_block_forward.3} parent=11 // pred_check_branch
        %232 = sbr.rel (%p230) target = $region24
      $region23: #{conv3d_block_forward.3} parent=11 // pred_region
        _
      $region24: #{conv3d_block_forward.3} parent=11 // pred_fallthru
        _
    $region12: #{conv3d_block_forward.3} parent=5 // pred_fallthru
      _
    %p233 = scmp.lt.s32.totalorder %s12, 16
    // Predicated region
    $region25: #{conv3d_block_forward.3} parent=5 // pred_check
      %p234 = pneg %p233
    $region26: #{conv3d_block_forward.3} parent=5 // pred_check_branch
      %236 = sbr.rel (%p234) target = $region28
    $region27: #{conv3d_block_forward.3} parent=5 // pred_region
      // Predicated region
      $region29: #{conv3d_block_forward.3} parent=27 // pred_check
        %p237 = pneg %p48
      $region30: #{conv3d_block_forward.3} parent=27 // pred_check_branch
        %239 = sbr.rel (%p237) target = $region32
      $region31: #{conv3d_block_forward.3} parent=27 // pred_region
        %s240 = smul.u32 %s19, 10
        %s241 = sadd.s32 %s240, %s20
        %p242 = scmp.lt.s32.totalorder %s241, 19
        %s243 = scalar_select %p242, %s241, 19
        %s244 = smul.addr %s243, 10
        %s245 = smul.addr %s244, 4
        %s246 = scalar_lea.vmem %s0, %s245
        %s247 = smul.u32 %s19, 10
        %s248 = sadd.s32 %s247, %s20
      $region32: #{conv3d_block_forward.3} parent=27 // pred_fallthru
        _
      // Predicated region
      $region33: #{conv3d_block_forward.3} parent=27 // pred_check
        %p249 = pneg %p80
      $region34: #{conv3d_block_forward.3} parent=27 // pred_check_branch
        %251 = sbr.rel (%p249) target = $region36
      $region35: #{conv3d_block_forward.3} parent=27 // pred_region
        %s252 = smul.u32 %s19, 10
        %s253 = sadd.s32 %s252, %s20
        %s254 = sadd.s32 %s253, 1
        %p255 = scmp.lt.s32.totalorder %s254, 19
        %s256 = scalar_select %p255, %s254, 19
        %s257 = smul.addr %s256, 10
        %s258 = smul.addr %s257, 4
        %s259 = scalar_lea.vmem %s1, %s258
        %s260 = smul.u32 %s19, 10
        %s261 = sadd.s32 %s260, %s20
        %s262 = sadd.s32 %s261, 1
      $region36: #{conv3d_block_forward.3} parent=27 // pred_fallthru
        _
      // Predicated region
      $region37: #{conv3d_block_forward.3} parent=27 // pred_check
        %p263 = pneg %p112
      $region38: #{conv3d_block_forward.3} parent=27 // pred_check_branch
        %265 = sbr.rel (%p263) target = $region40
      $region39: #{conv3d_block_forward.3} parent=27 // pred_region
        %s266 = smul.u32 %s19, 10
        %s267 = sadd.s32 %s266, %s20
        %s268 = sadd.s32 %s267, 2
        %p269 = scmp.lt.s32.totalorder %s268, 19
        %s270 = scalar_select %p269, %s268, 19
        %s271 = smul.addr %s270, 10
        %s272 = smul.addr %s271, 4
        %s273 = scalar_lea.vmem %s2, %s272
        %s274 = smul.u32 %s19, 10
        %s275 = sadd.s32 %s274, %s20
        %s276 = sadd.s32 %s275, 2
      $region40: #{conv3d_block_forward.3} parent=27 // pred_fallthru
        _
    $region28: #{conv3d_block_forward.3} parent=5 // pred_fallthru
      _
    %p277 = scmp.le.s32.totalorder 1, %s12
    %p278 = scmp.lt.s32.totalorder %s12, 17
    %p279 = pnand %p277, %p278
    %p280 = pneg %p279
    // Predicated region
    $region41: #{conv3d_block_forward.3} parent=5 // pred_check
      _
    $region42: #{conv3d_block_forward.3} parent=5 // pred_check_branch
      %282 = sbr.rel (%p279) target = $region44
    $region43: #{conv3d_block_forward.3} parent=5 // pred_region
      %s283 = ssub.s32 %s12, 1
      %s284 = smul.u32 %s21, 10
      %s285 = sadd.s32 %s284, %s22
      %p286 = scmp.lt.s32.totalorder %s285, 19
      %s287 = scalar_select %p286, %s285, 19
      %s288 = smul.addr %s287, 10
      %s289 = smul.addr %s288, 4
      %s290 = scalar_lea.vmem %s0, %s289
      %p291 = pneg %p54
      %p292 = pneg %p51
      %s293 = smul.u32 %s21, 10
      %s294 = sadd.s32 %s293, %s22
      %s295 = sadd.s32 %s294, 1
      %p296 = scmp.lt.s32.totalorder %s295, 19
      %s297 = scalar_select %p296, %s295, 19
      %s298 = smul.addr %s297, 10
      %s299 = smul.addr %s298, 4
      %s300 = scalar_lea.vmem %s1, %s299
      %p301 = pneg %p86
      %p302 = pneg %p83
      %s303 = smul.u32 %s21, 10
      %s304 = sadd.s32 %s303, %s22
      %s305 = sadd.s32 %s304, 2
      %p306 = scmp.lt.s32.totalorder %s305, 19
      %s307 = scalar_select %p306, %s305, 19
      %s308 = smul.addr %s307, 10
      %s309 = smul.addr %s308, 4
      %s310 = scalar_lea.vmem %s2, %s309
      %p311 = pneg %p118
      %p312 = pneg %p115
      %p313 = pneg %p139
      %p314 = pneg %p136
      %p315 = pneg %p160
      %p316 = pneg %p157
      %p317 = pneg %p181
      %p318 = pneg %p178
      %p319 = pneg %p209
      %p320 = pneg %p206
      %p321 = scmp.lt.s32.totalorder %s21, 1
      %s322 = scalar_select %p321, %s21, 1
      %p323 = scmp.lt.s32.totalorder %s22, 7
      %s324 = scalar_select %p323, %s22, 7
      %s325 = smul.addr %s322, 8
      %s326 = sadd.s32 %s324, %s325
      %s327 = smul.addr %s326, 8
      %s328 = scalar_lea.vmem %s6, %s327
      %s329 = smul.u32 %s21, 10
      %s330 = sadd.s32 %s329, %s22
      %p331 = scmp.lt.s32.totalorder %s330, 19
      %s332 = scalar_select %p331, %s330, 19
      %s333 = smul.addr %s332, 10
      %s334 = smul.addr %s333, 4
      %s335 = scalar_lea.vmem %s0, %s334
      %s336 = smul.u32 %s21, 10
      %s337 = sadd.s32 %s336, %s22
      %s338 = smul.u32 %s21, 10
      %s339 = sadd.s32 %s338, %s22
      %s340 = sadd.s32 %s339, 1
      %p341 = scmp.lt.s32.totalorder %s340, 19
      %s342 = scalar_select %p341, %s340, 19
      %s343 = smul.addr %s342, 10
      %s344 = smul.addr %s343, 4
      %s345 = scalar_lea.vmem %s1, %s344
      %s346 = smul.u32 %s21, 10
      %s347 = sadd.s32 %s346, %s22
      %s348 = sadd.s32 %s347, 1
      %s349 = smul.u32 %s21, 10
      %s350 = sadd.s32 %s349, %s22
      %s351 = sadd.s32 %s350, 2
      %p352 = scmp.lt.s32.totalorder %s351, 19
      %s353 = scalar_select %p352, %s351, 19
      %s354 = smul.addr %s353, 10
      %s355 = smul.addr %s354, 4
      %s356 = scalar_lea.vmem %s2, %s355
      %s357 = smul.u32 %s21, 10
      %s358 = sadd.s32 %s357, %s22
      %s359 = sadd.s32 %s358, 2
      %p360 = scmp.lt.s32.totalorder %s21, 1
      %s361 = scalar_select %p360, %s21, 1
      %p362 = scmp.lt.s32.totalorder %s22, 7
      %s363 = scalar_select %p362, %s22, 7
      %s364 = smul.addr %s361, 8
      %s365 = sadd.s32 %s363, %s364
      %s366 = smul.addr %s365, 8
      %s367 = scalar_lea.vmem %s6, %s366
      %v369 = vld [vmem:[%s335] sm:$0xf]
      %v370 = vld [vmem:[%s335 + $0x4] sm:$0xf]
      %v371 = vld [vmem:[%s335 + $0x8] sm:$0xf]
      %v372 = vld [vmem:[%s335 + $0xc] sm:$0xf]
      %v373 = vld [vmem:[%s335 + $0x10] sm:$0xf]
      %v374 = vld [vmem:[%s335 + $0x14] sm:$0xf]
      %v375 = vld [vmem:[%s335 + $0x18] sm:$0xf]
      %v376 = vld [vmem:[%s335 + $0x1c] sm:$0xf]
      %v377 = vld [vmem:[%s335 + $0x20] sm:$0xf]
      %v378 = vld [vmem:[%s335 + $0x24] sm:$0xf]
      %v379 = vld [vmem:[%s3] sm:$0xf]
      %s380 = scalar_lea.vmem %s3, 4
      %v381 = vld [vmem:[%s380] sm:$0xf]
      %v390 = vunpack.c.l.b16 %v370
      %v391 = vunpack.c.l.b16 %v371
      %v392 = vunpack.c.l.b16 %v372
      %v393 = vunpack.c.l.b16 %v373
      %v394 = vunpack.c.l.b16 %v374
      %v395 = vunpack.c.l.b16 %v375
      %v396 = vunpack.c.l.b16 %v376
      %v397 = vunpack.c.l.b16 %v377
      %v398 = vpack.c.b16 %v391, %v390
      %v399 = vpack.c.b16 %v393, %v392
      %v400 = vpack.c.b16 %v395, %v394
      %v401 = vpack.c.b16 %v397, %v396
      %vm402 = vcmask 97280
      %v404 = vsel %vm402, %v381, 0
      %v407 = vsel %vm402, %v398, 0
      %v410 = vsel %vm402, %v399, 0
      %v413 = vsel %vm402, %v400, 0
      %v416 = vsel %vm402, %v401, 0
      %418 = vmatprep.subr.bf16.mxu0 0
      %419 = vmatpush1.bf16.xpose.msra.mxu0 0
      %420 = vmatprep.subr.bf16.mxu0 0
      %421 = vmatpush1.bf16.xpose.msra.mxu0 0
      %422 = vmatprep.subr.bf16.mxu0 0
      %423 = vmatpush1.bf16.xpose.msra.mxu0 0
      %424 = vmatprep.subr.bf16.mxu0 0
      %425 = vmatpush1.bf16.xpose.msra.mxu0 0
      %426 = vmatprep.subr.bf16.mxu0 0
      %427 = vmatpush1.bf16.xpose.msra.mxu0 %v416
      %428 = vmatprep.subr.bf16.mxu0 0
      %429 = vmatpush1.bf16.xpose.msra.mxu0 %v413
      %430 = vmatprep.subr.bf16.mxu0 0
      %431 = vmatpush1.bf16.xpose.msra.mxu0 %v410
      %432 = vmatprep.subr.bf16.mxu0 0
      %433 = vmatpush1.bf16.xpose.msra.mxu0 %v407
      %434 = vmatprep.subr.bf16.mxu0 0
      %435 = vmatpush2.bf16.xpose.msra.mxu0 0
      %436 = vmatprep.subr.bf16.mxu0 0
      %437 = vmatpush2.bf16.xpose.msra.mxu0 0
      %438 = vmatprep.subr.bf16.mxu0 0
      %439 = vmatpush2.bf16.xpose.msra.mxu0 0
      %440 = vmatprep.subr.bf16.mxu0 0
      %441 = vmatpush2.bf16.xpose.msra.mxu0 0
      %442 = vmatprep.subr.bf16.mxu0 0
      %443 = vmatpush2.bf16.xpose.msra.mxu0 0
      %444 = vmatprep.subr.bf16.mxu0 0
      %445 = vmatpush2.bf16.xpose.msra.mxu0 0
      %446 = vmatprep.subr.bf16.mxu0 0
      %447 = vmatpush2.bf16.xpose.msra.mxu0 0
      %448 = vmatprep.subr.bf16.mxu0 0
      %449 = vmatpush2.bf16.xpose.msra.mxu0 0
      %450 = vmatprep.mubr.bf16.mxu0 0
      %451 = vmatmul.mubr.bf16.gmra.mxu0 %v404
      %v452 = vpop.f32.mrf.mxu0
      %v453 = vadd.f32 0.0, %v452
      %v454 = vpop.f32.mrf.mxu0
      %v455 = vpop.f32.mrf.mxu0
      %v456 = vpop.f32.mrf.mxu0
      %457 = vdwg.mxu0
      %v459 = vunpack.c.l.b16 %v369
      %v460 = vpack.c.b16 %v390, %v459
      %v461 = vpack.c.b16 %v392, %v391
      %v462 = vpack.c.b16 %v394, %v393
      %v463 = vpack.c.b16 %v396, %v395
      %v465 = vsel %vm402, %v379, 0
      %v468 = vsel %vm402, %v460, 0
      %v471 = vsel %vm402, %v461, 0
      %v474 = vsel %vm402, %v462, 0
      %v477 = vsel %vm402, %v463, 0
      %479 = vmatprep.subr.bf16.mxu0 0
      %480 = vmatpush1.bf16.xpose.msra.mxu0 0
      %481 = vmatprep.subr.bf16.mxu0 0
      %482 = vmatpush1.bf16.xpose.msra.mxu0 0
      %483 = vmatprep.subr.bf16.mxu0 0
      %484 = vmatpush1.bf16.xpose.msra.mxu0 0
      %485 = vmatprep.subr.bf16.mxu0 0
      %486 = vmatpush1.bf16.xpose.msra.mxu0 0
      %487 = vmatprep.subr.bf16.mxu0 0
      %488 = vmatpush1.bf16.xpose.msra.mxu0 %v477
      %489 = vmatprep.subr.bf16.mxu0 0
      %490 = vmatpush1.bf16.xpose.msra.mxu0 %v474
      %491 = vmatprep.subr.bf16.mxu0 0
      %492 = vmatpush1.bf16.xpose.msra.mxu0 %v471
      %493 = vmatprep.subr.bf16.mxu0 0
      %494 = vmatpush1.bf16.xpose.msra.mxu0 %v468
      %495 = vmatprep.subr.bf16.mxu0 0
      %496 = vmatpush2.bf16.xpose.msra.mxu0 0
      %497 = vmatprep.subr.bf16.mxu0 0
      %498 = vmatpush2.bf16.xpose.msra.mxu0 0
      %499 = vmatprep.subr.bf16.mxu0 0
      %500 = vmatpush2.bf16.xpose.msra.mxu0 0
      %501 = vmatprep.subr.bf16.mxu0 0
      %502 = vmatpush2.bf16.xpose.msra.mxu0 0
      %503 = vmatprep.subr.bf16.mxu0 0
      %504 = vmatpush2.bf16.xpose.msra.mxu0 0
      %505 = vmatprep.subr.bf16.mxu0 0
      %506 = vmatpush2.bf16.xpose.msra.mxu0 0
      %507 = vmatprep.subr.bf16.mxu0 0
      %508 = vmatpush2.bf16.xpose.msra.mxu0 0
      %509 = vmatprep.subr.bf16.mxu0 0
      %510 = vmatpush2.bf16.xpose.msra.mxu0 0
      %511 = vmatprep.mubr.bf16.mxu0 0
      %512 = vmatmul.mubr.bf16.gmra.mxu0 %v465
      %v513 = vpop.f32.mrf.mxu0
      %v514 = vadd.f32 %v453, %v513
      %v515 = vpop.f32.mrf.mxu0
      %v516 = vpop.f32.mrf.mxu0
      %v517 = vpop.f32.mrf.mxu0
      %518 = vdwg.mxu0
      %s519 = scalar_lea.vmem %s3, 8
      %v520 = vld [vmem:[%s519] sm:$0xf]
      %v522 = vunpack.c.l.b16 %v378
      %v523 = vpack.c.b16 %v522, %v397
      %v525 = vsel %vm402, %v520, 0
      %v528 = vsel %vm402, %v523, 0
      %530 = vmatprep.subr.bf16.mxu0 0
      %531 = vmatpush1.bf16.xpose.msra.mxu0 0
      %532 = vmatprep.subr.bf16.mxu0 0
      %533 = vmatpush1.bf16.xpose.msra.mxu0 0
      %534 = vmatprep.subr.bf16.mxu0 0
      %535 = vmatpush1.bf16.xpose.msra.mxu0 0
      %536 = vmatprep.subr.bf16.mxu0 0
      %537 = vmatpush1.bf16.xpose.msra.mxu0 0
      %538 = vmatprep.subr.bf16.mxu0 0
      %539 = vmatpush1.bf16.xpose.msra.mxu0 %v528
      %540 = vmatprep.subr.bf16.mxu0 0
      %541 = vmatpush1.bf16.xpose.msra.mxu0 %v477
      %542 = vmatprep.subr.bf16.mxu0 0
      %543 = vmatpush1.bf16.xpose.msra.mxu0 %v474
      %544 = vmatprep.subr.bf16.mxu0 0
      %545 = vmatpush1.bf16.xpose.msra.mxu0 %v471
      %546 = vmatprep.subr.bf16.mxu0 0
      %547 = vmatpush2.bf16.xpose.msra.mxu0 0
      %548 = vmatprep.subr.bf16.mxu0 0
      %549 = vmatpush2.bf16.xpose.msra.mxu0 0
      %550 = vmatprep.subr.bf16.mxu0 0
      %551 = vmatpush2.bf16.xpose.msra.mxu0 0
      %552 = vmatprep.subr.bf16.mxu0 0
      %553 = vmatpush2.bf16.xpose.msra.mxu0 0
      %554 = vmatprep.subr.bf16.mxu0 0
      %555 = vmatpush2.bf16.xpose.msra.mxu0 0
      %556 = vmatprep.subr.bf16.mxu0 0
      %557 = vmatpush2.bf16.xpose.msra.mxu0 0
      %558 = vmatprep.subr.bf16.mxu0 0
      %559 = vmatpush2.bf16.xpose.msra.mxu0 0
      %560 = vmatprep.subr.bf16.mxu0 0
      %561 = vmatpush2.bf16.xpose.msra.mxu0 0
      %562 = vmatprep.mubr.bf16.mxu0 0
      %563 = vmatmul.mubr.bf16.gmra.mxu0 %v525
      %v564 = vpop.f32.mrf.mxu0
      %v565 = vadd.f32 0.0, %v564
      %v566 = vpop.f32.mrf.mxu0
      %v567 = vpop.f32.mrf.mxu0
      %v568 = vpop.f32.mrf.mxu0
      %569 = vdwg.mxu0
      %v570 = vadd.f32 %v514, %v565
      %v571 = vld [vmem:[%s345] sm:$0xf]
      %v572 = vld [vmem:[%s345 + $0x4] sm:$0xf]
      %v573 = vld [vmem:[%s345 + $0x8] sm:$0xf]
      %v574 = vld [vmem:[%s345 + $0xc] sm:$0xf]
      %v575 = vld [vmem:[%s345 + $0x10] sm:$0xf]
      %v576 = vld [vmem:[%s345 + $0x14] sm:$0xf]
      %v577 = vld [vmem:[%s345 + $0x18] sm:$0xf]
      %v578 = vld [vmem:[%s345 + $0x1c] sm:$0xf]
      %v579 = vld [vmem:[%s345 + $0x20] sm:$0xf]
      %v580 = vld [vmem:[%s345 + $0x24] sm:$0xf]
      %s581 = scalar_lea.vmem %s3, 12
      %v582 = vld [vmem:[%s581] sm:$0xf]
      %v591 = vunpack.c.l.b16 %v571
      %v592 = vunpack.c.l.b16 %v572
      %v593 = vunpack.c.l.b16 %v573
      %v594 = vunpack.c.l.b16 %v574
      %v595 = vunpack.c.l.b16 %v575
      %v596 = vunpack.c.l.b16 %v576
      %v597 = vunpack.c.l.b16 %v577
      %v598 = vunpack.c.l.b16 %v578
      %v599 = vpack.c.b16 %v592, %v591
      %v600 = vpack.c.b16 %v594, %v593
      %v601 = vpack.c.b16 %v596, %v595
      %v602 = vpack.c.b16 %v598, %v597
      %v604 = vsel %vm402, %v582, 0
      %v607 = vsel %vm402, %v599, 0
      %v610 = vsel %vm402, %v600, 0
      %v613 = vsel %vm402, %v601, 0
      %v616 = vsel %vm402, %v602, 0
      %618 = vmatprep.subr.bf16.mxu0 0
      %619 = vmatpush1.bf16.xpose.msra.mxu0 0
      %620 = vmatprep.subr.bf16.mxu0 0
      %621 = vmatpush1.bf16.xpose.msra.mxu0 0
      %622 = vmatprep.subr.bf16.mxu0 0
      %623 = vmatpush1.bf16.xpose.msra.mxu0 0
      %624 = vmatprep.subr.bf16.mxu0 0
      %625 = vmatpush1.bf16.xpose.msra.mxu0 0
      %626 = vmatprep.subr.bf16.mxu0 0
      %627 = vmatpush1.bf16.xpose.msra.mxu0 %v616
      %628 = vmatprep.subr.bf16.mxu0 0
      %629 = vmatpush1.bf16.xpose.msra.mxu0 %v613
      %630 = vmatprep.subr.bf16.mxu0 0
      %631 = vmatpush1.bf16.xpose.msra.mxu0 %v610
      %632 = vmatprep.subr.bf16.mxu0 0
      %633 = vmatpush1.bf16.xpose.msra.mxu0 %v607
      %634 = vmatprep.subr.bf16.mxu0 0
      %635 = vmatpush2.bf16.xpose.msra.mxu0 0
      %636 = vmatprep.subr.bf16.mxu0 0
      %637 = vmatpush2.bf16.xpose.msra.mxu0 0
      %638 = vmatprep.subr.bf16.mxu0 0
      %639 = vmatpush2.bf16.xpose.msra.mxu0 0
      %640 = vmatprep.subr.bf16.mxu0 0
      %641 = vmatpush2.bf16.xpose.msra.mxu0 0
      %642 = vmatprep.subr.bf16.mxu0 0
      %643 = vmatpush2.bf16.xpose.msra.mxu0 0
      %644 = vmatprep.subr.bf16.mxu0 0
      %645 = vmatpush2.bf16.xpose.msra.mxu0 0
      %646 = vmatprep.subr.bf16.mxu0 0
      %647 = vmatpush2.bf16.xpose.msra.mxu0 0
      %648 = vmatprep.subr.bf16.mxu0 0
      %649 = vmatpush2.bf16.xpose.msra.mxu0 0
      %650 = vmatprep.mubr.bf16.mxu0 0
      %651 = vmatmul.mubr.bf16.gmra.mxu0 %v604
      %v652 = vpop.f32.mrf.mxu0
      %v653 = vadd.f32 0.0, %v652
      %v654 = vpop.f32.mrf.mxu0
      %v655 = vpop.f32.mrf.mxu0
      %v656 = vpop.f32.mrf.mxu0
      %657 = vdwg.mxu0
      %v658 = vadd.f32 %v570, %v653
      %s659 = scalar_lea.vmem %s3, 16
      %v660 = vld [vmem:[%s659] sm:$0xf]
      %v662 = vunpack.c.l.b16 %v579
      %v663 = vpack.c.b16 %v593, %v592
      %v664 = vpack.c.b16 %v595, %v594
      %v665 = vpack.c.b16 %v597, %v596
      %v666 = vpack.c.b16 %v662, %v598
      %v668 = vsel %vm402, %v660, 0
      %v671 = vsel %vm402, %v663, 0
      %v674 = vsel %vm402, %v664, 0
      %v677 = vsel %vm402, %v665, 0
      %v680 = vsel %vm402, %v666, 0
      %682 = vmatprep.subr.bf16.mxu0 0
      %683 = vmatpush1.bf16.xpose.msra.mxu0 0
      %684 = vmatprep.subr.bf16.mxu0 0
      %685 = vmatpush1.bf16.xpose.msra.mxu0 0
      %686 = vmatprep.subr.bf16.mxu0 0
      %687 = vmatpush1.bf16.xpose.msra.mxu0 0
      %688 = vmatprep.subr.bf16.mxu0 0
      %689 = vmatpush1.bf16.xpose.msra.mxu0 0
      %690 = vmatprep.subr.bf16.mxu0 0
      %691 = vmatpush1.bf16.xpose.msra.mxu0 %v680
      %692 = vmatprep.subr.bf16.mxu0 0
      %693 = vmatpush1.bf16.xpose.msra.mxu0 %v677
      %694 = vmatprep.subr.bf16.mxu0 0
      %695 = vmatpush1.bf16.xpose.msra.mxu0 %v674
      %696 = vmatprep.subr.bf16.mxu0 0
      %697 = vmatpush1.bf16.xpose.msra.mxu0 %v671
      %698 = vmatprep.subr.bf16.mxu0 0
      %699 = vmatpush2.bf16.xpose.msra.mxu0 0
      %700 = vmatprep.subr.bf16.mxu0 0
      %701 = vmatpush2.bf16.xpose.msra.mxu0 0
      %702 = vmatprep.subr.bf16.mxu0 0
      %703 = vmatpush2.bf16.xpose.msra.mxu0 0
      %704 = vmatprep.subr.bf16.mxu0 0
      %705 = vmatpush2.bf16.xpose.msra.mxu0 0
      %706 = vmatprep.subr.bf16.mxu0 0
      %707 = vmatpush2.bf16.xpose.msra.mxu0 0
      %708 = vmatprep.subr.bf16.mxu0 0
      %709 = vmatpush2.bf16.xpose.msra.mxu0 0
      %710 = vmatprep.subr.bf16.mxu0 0
      %711 = vmatpush2.bf16.xpose.msra.mxu0 0
      %712 = vmatprep.subr.bf16.mxu0 0
      %713 = vmatpush2.bf16.xpose.msra.mxu0 0
      %714 = vmatprep.mubr.bf16.mxu0 0
      %715 = vmatmul.mubr.bf16.gmra.mxu0 %v668
      %v716 = vpop.f32.mrf.mxu0
      %v717 = vadd.f32 0.0, %v716
      %v718 = vpop.f32.mrf.mxu0
      %v719 = vpop.f32.mrf.mxu0
      %v720 = vpop.f32.mrf.mxu0
      %721 = vdwg.mxu0
      %v722 = vadd.f32 %v658, %v717
      %s723 = scalar_lea.vmem %s3, 20
      %v724 = vld [vmem:[%s723] sm:$0xf]
      %v726 = vunpack.c.l.b16 %v580
      %v727 = vpack.c.b16 %v726, %v662
      %v729 = vsel %vm402, %v724, 0
      %v732 = vsel %vm402, %v727, 0
      %734 = vmatprep.subr.bf16.mxu0 0
      %735 = vmatpush1.bf16.xpose.msra.mxu0 0
      %736 = vmatprep.subr.bf16.mxu0 0
      %737 = vmatpush1.bf16.xpose.msra.mxu0 0
      %738 = vmatprep.subr.bf16.mxu0 0
      %739 = vmatpush1.bf16.xpose.msra.mxu0 0
      %740 = vmatprep.subr.bf16.mxu0 0
      %741 = vmatpush1.bf16.xpose.msra.mxu0 0
      %742 = vmatprep.subr.bf16.mxu0 0
      %743 = vmatpush1.bf16.xpose.msra.mxu0 %v732
      %744 = vmatprep.subr.bf16.mxu0 0
      %745 = vmatpush1.bf16.xpose.msra.mxu0 %v616
      %746 = vmatprep.subr.bf16.mxu0 0
      %747 = vmatpush1.bf16.xpose.msra.mxu0 %v613
      %748 = vmatprep.subr.bf16.mxu0 0
      %749 = vmatpush1.bf16.xpose.msra.mxu0 %v610
      %750 = vmatprep.subr.bf16.mxu0 0
      %751 = vmatpush2.bf16.xpose.msra.mxu0 0
      %752 = vmatprep.subr.bf16.mxu0 0
      %753 = vmatpush2.bf16.xpose.msra.mxu0 0
      %754 = vmatprep.subr.bf16.mxu0 0
      %755 = vmatpush2.bf16.xpose.msra.mxu0 0
      %756 = vmatprep.subr.bf16.mxu0 0
      %757 = vmatpush2.bf16.xpose.msra.mxu0 0
      %758 = vmatprep.subr.bf16.mxu0 0
      %759 = vmatpush2.bf16.xpose.msra.mxu0 0
      %760 = vmatprep.subr.bf16.mxu0 0
      %761 = vmatpush2.bf16.xpose.msra.mxu0 0
      %762 = vmatprep.subr.bf16.mxu0 0
      %763 = vmatpush2.bf16.xpose.msra.mxu0 0
      %764 = vmatprep.subr.bf16.mxu0 0
      %765 = vmatpush2.bf16.xpose.msra.mxu0 0
      %766 = vmatprep.mubr.bf16.mxu0 0
      %767 = vmatmul.mubr.bf16.gmra.mxu0 %v729
      %v768 = vpop.f32.mrf.mxu0
      %v769 = vadd.f32 0.0, %v768
      %v770 = vpop.f32.mrf.mxu0
      %v771 = vpop.f32.mrf.mxu0
      %v772 = vpop.f32.mrf.mxu0
      %773 = vdwg.mxu0
      %v774 = vadd.f32 %v722, %v769
      %v775 = vld [vmem:[%s356] sm:$0xf]
      %v776 = vld [vmem:[%s356 + $0x4] sm:$0xf]
      %v777 = vld [vmem:[%s356 + $0x8] sm:$0xf]
      %v778 = vld [vmem:[%s356 + $0xc] sm:$0xf]
      %v779 = vld [vmem:[%s356 + $0x10] sm:$0xf]
      %v780 = vld [vmem:[%s356 + $0x14] sm:$0xf]
      %v781 = vld [vmem:[%s356 + $0x18] sm:$0xf]
      %v782 = vld [vmem:[%s356 + $0x1c] sm:$0xf]
      %v783 = vld [vmem:[%s356 + $0x20] sm:$0xf]
      %v784 = vld [vmem:[%s356 + $0x24] sm:$0xf]
      %s785 = scalar_lea.vmem %s3, 24
      %v786 = vld [vmem:[%s785] sm:$0xf]
      %v795 = vunpack.c.l.b16 %v775
      %v796 = vunpack.c.l.b16 %v776
      %v797 = vunpack.c.l.b16 %v777
      %v798 = vunpack.c.l.b16 %v778
      %v799 = vunpack.c.l.b16 %v779
      %v800 = vunpack.c.l.b16 %v780
      %v801 = vunpack.c.l.b16 %v781
      %v802 = vunpack.c.l.b16 %v782
      %v803 = vpack.c.b16 %v796, %v795
      %v804 = vpack.c.b16 %v798, %v797
      %v805 = vpack.c.b16 %v800, %v799
      %v806 = vpack.c.b16 %v802, %v801
      %v808 = vsel %vm402, %v786, 0
      %v811 = vsel %vm402, %v803, 0
      %v814 = vsel %vm402, %v804, 0
      %v817 = vsel %vm402, %v805, 0
      %v820 = vsel %vm402, %v806, 0
      %822 = vmatprep.subr.bf16.mxu0 0
      %823 = vmatpush1.bf16.xpose.msra.mxu0 0
      %824 = vmatprep.subr.bf16.mxu0 0
      %825 = vmatpush1.bf16.xpose.msra.mxu0 0
      %826 = vmatprep.subr.bf16.mxu0 0
      %827 = vmatpush1.bf16.xpose.msra.mxu0 0
      %828 = vmatprep.subr.bf16.mxu0 0
      %829 = vmatpush1.bf16.xpose.msra.mxu0 0
      %830 = vmatprep.subr.bf16.mxu0 0
      %831 = vmatpush1.bf16.xpose.msra.mxu0 %v820
      %832 = vmatprep.subr.bf16.mxu0 0
      %833 = vmatpush1.bf16.xpose.msra.mxu0 %v817
      %834 = vmatprep.subr.bf16.mxu0 0
      %835 = vmatpush1.bf16.xpose.msra.mxu0 %v814
      %836 = vmatprep.subr.bf16.mxu0 0
      %837 = vmatpush1.bf16.xpose.msra.mxu0 %v811
      %838 = vmatprep.subr.bf16.mxu0 0
      %839 = vmatpush2.bf16.xpose.msra.mxu0 0
      %840 = vmatprep.subr.bf16.mxu0 0
      %841 = vmatpush2.bf16.xpose.msra.mxu0 0
      %842 = vmatprep.subr.bf16.mxu0 0
      %843 = vmatpush2.bf16.xpose.msra.mxu0 0
      %844 = vmatprep.subr.bf16.mxu0 0
      %845 = vmatpush2.bf16.xpose.msra.mxu0 0
      %846 = vmatprep.subr.bf16.mxu0 0
      %847 = vmatpush2.bf16.xpose.msra.mxu0 0
      %848 = vmatprep.subr.bf16.mxu0 0
      %849 = vmatpush2.bf16.xpose.msra.mxu0 0
      %850 = vmatprep.subr.bf16.mxu0 0
      %851 = vmatpush2.bf16.xpose.msra.mxu0 0
      %852 = vmatprep.subr.bf16.mxu0 0
      %853 = vmatpush2.bf16.xpose.msra.mxu0 0
      %854 = vmatprep.mubr.bf16.mxu0 0
      %855 = vmatmul.mubr.bf16.gmra.mxu0 %v808
      %v856 = vpop.f32.mrf.mxu0
      %v857 = vadd.f32 0.0, %v856
      %v858 = vpop.f32.mrf.mxu0
      %v859 = vpop.f32.mrf.mxu0
      %v860 = vpop.f32.mrf.mxu0
      %861 = vdwg.mxu0
      %v862 = vadd.f32 %v774, %v857
      %s863 = scalar_lea.vmem %s3, 28
      %v864 = vld [vmem:[%s863] sm:$0xf]
      %v866 = vunpack.c.l.b16 %v783
      %v867 = vpack.c.b16 %v797, %v796
      %v868 = vpack.c.b16 %v799, %v798
      %v869 = vpack.c.b16 %v801, %v800
      %v870 = vpack.c.b16 %v866, %v802
      %v872 = vsel %vm402, %v864, 0
      %v875 = vsel %vm402, %v867, 0
      %v878 = vsel %vm402, %v868, 0
      %v881 = vsel %vm402, %v869, 0
      %v884 = vsel %vm402, %v870, 0
      %886 = vmatprep.subr.bf16.mxu0 0
      %887 = vmatpush1.bf16.xpose.msra.mxu0 0
      %888 = vmatprep.subr.bf16.mxu0 0
      %889 = vmatpush1.bf16.xpose.msra.mxu0 0
      %890 = vmatprep.subr.bf16.mxu0 0
      %891 = vmatpush1.bf16.xpose.msra.mxu0 0
      %892 = vmatprep.subr.bf16.mxu0 0
      %893 = vmatpush1.bf16.xpose.msra.mxu0 0
      %894 = vmatprep.subr.bf16.mxu0 0
      %895 = vmatpush1.bf16.xpose.msra.mxu0 %v884
      %896 = vmatprep.subr.bf16.mxu0 0
      %897 = vmatpush1.bf16.xpose.msra.mxu0 %v881
      %898 = vmatprep.subr.bf16.mxu0 0
      %899 = vmatpush1.bf16.xpose.msra.mxu0 %v878
      %900 = vmatprep.subr.bf16.mxu0 0
      %901 = vmatpush1.bf16.xpose.msra.mxu0 %v875
      %902 = vmatprep.subr.bf16.mxu0 0
      %903 = vmatpush2.bf16.xpose.msra.mxu0 0
      %904 = vmatprep.subr.bf16.mxu0 0
      %905 = vmatpush2.bf16.xpose.msra.mxu0 0
      %906 = vmatprep.subr.bf16.mxu0 0
      %907 = vmatpush2.bf16.xpose.msra.mxu0 0
      %908 = vmatprep.subr.bf16.mxu0 0
      %909 = vmatpush2.bf16.xpose.msra.mxu0 0
      %910 = vmatprep.subr.bf16.mxu0 0
      %911 = vmatpush2.bf16.xpose.msra.mxu0 0
      %912 = vmatprep.subr.bf16.mxu0 0
      %913 = vmatpush2.bf16.xpose.msra.mxu0 0
      %914 = vmatprep.subr.bf16.mxu0 0
      %915 = vmatpush2.bf16.xpose.msra.mxu0 0
      %916 = vmatprep.subr.bf16.mxu0 0
      %917 = vmatpush2.bf16.xpose.msra.mxu0 0
      %918 = vmatprep.mubr.bf16.mxu0 0
      %919 = vmatmul.mubr.bf16.gmra.mxu0 %v872
      %v920 = vpop.f32.mrf.mxu0
      %v921 = vadd.f32 0.0, %v920
      %v922 = vpop.f32.mrf.mxu0
      %v923 = vpop.f32.mrf.mxu0
      %v924 = vpop.f32.mrf.mxu0
      %925 = vdwg.mxu0
      %v926 = vadd.f32 %v862, %v921
      %s927 = scalar_lea.vmem %s3, 32
      %v928 = vld [vmem:[%s927] sm:$0xf]
      %v930 = vunpack.c.l.b16 %v784
      %v931 = vpack.c.b16 %v930, %v866
      %v933 = vsel %vm402, %v928, 0
      %v936 = vsel %vm402, %v931, 0
      %938 = vmatprep.subr.bf16.mxu0 0
      %939 = vmatpush1.bf16.xpose.msra.mxu0 0
      %940 = vmatprep.subr.bf16.mxu0 0
      %941 = vmatpush1.bf16.xpose.msra.mxu0 0
      %942 = vmatprep.subr.bf16.mxu0 0
      %943 = vmatpush1.bf16.xpose.msra.mxu0 0
      %944 = vmatprep.subr.bf16.mxu0 0
      %945 = vmatpush1.bf16.xpose.msra.mxu0 0
      %946 = vmatprep.subr.bf16.mxu0 0
      %947 = vmatpush1.bf16.xpose.msra.mxu0 %v936
      %948 = vmatprep.subr.bf16.mxu0 0
      %949 = vmatpush1.bf16.xpose.msra.mxu0 %v820
      %950 = vmatprep.subr.bf16.mxu0 0
      %951 = vmatpush1.bf16.xpose.msra.mxu0 %v817
      %952 = vmatprep.subr.bf16.mxu0 0
      %953 = vmatpush1.bf16.xpose.msra.mxu0 %v814
      %954 = vmatprep.subr.bf16.mxu0 0
      %955 = vmatpush2.bf16.xpose.msra.mxu0 0
      %956 = vmatprep.subr.bf16.mxu0 0
      %957 = vmatpush2.bf16.xpose.msra.mxu0 0
      %958 = vmatprep.subr.bf16.mxu0 0
      %959 = vmatpush2.bf16.xpose.msra.mxu0 0
      %960 = vmatprep.subr.bf16.mxu0 0
      %961 = vmatpush2.bf16.xpose.msra.mxu0 0
      %962 = vmatprep.subr.bf16.mxu0 0
      %963 = vmatpush2.bf16.xpose.msra.mxu0 0
      %964 = vmatprep.subr.bf16.mxu0 0
      %965 = vmatpush2.bf16.xpose.msra.mxu0 0
      %966 = vmatprep.subr.bf16.mxu0 0
      %967 = vmatpush2.bf16.xpose.msra.mxu0 0
      %968 = vmatprep.subr.bf16.mxu0 0
      %969 = vmatpush2.bf16.xpose.msra.mxu0 0
      %970 = vmatprep.mubr.bf16.mxu0 0
      %971 = vmatmul.mubr.bf16.gmra.mxu0 %v933
      %v972 = vpop.f32.mrf.mxu0
      %v973 = vadd.f32 0.0, %v972
      %v974 = vpop.f32.mrf.mxu0
      %v975 = vpop.f32.mrf.mxu0
      %v976 = vpop.f32.mrf.mxu0
      %977 = vdwg.mxu0
      %v978 = vadd.f32 %v926, %v973
      %v979 = vld [vmem:[%s4] sm:$0xff]
      %981 = vset.pattern.permute.xlu0 0
      %982 = vperm.xlu0 %981, %v979
      %v983 = vpop.permute.xlu0 %982
      %v985 = vmul.f32 %v978, %v983
      %v986 = vld [vmem:[%s5] sm:$0xff]
      %988 = vset.pattern.permute.xlu0 0
      %989 = vperm.xlu0 %988, %v986
      %v990 = vpop.permute.xlu0 %989
      %v992 = vadd.f32 %v985, %v990
      %v993 = vmax.f32 %v992, 0.0
      %vm994 = vcmask 523264
      %995 = vst.msk [vmem:[%s367] sm:$0xff] %vm994, %v993
      %p996 = scmp.lt.s32.totalorder %s21, 1
      %s997 = scalar_select %p996, %s21, 1
      %p998 = scmp.lt.s32.totalorder %s22, 7
      %s999 = scalar_select %p998, %s22, 7
      %s1000 = smul.addr %s997, 8
      %s1001 = sadd.s32 %s999, %s1000
      %s1002 = smul.addr %s1001, 8
      %s1003 = scalar_lea.vmem %s6, %s1002
      // Predicated region
      $region45: #{conv3d_block_forward.3} parent=43 // pred_check
        %p1004 = pneg %p206
      $region46: #{conv3d_block_forward.3} parent=43 // pred_check_branch
        %1006 = sbr.rel (%p1004) target = $region48
      $region47: #{conv3d_block_forward.3} parent=43 // pred_region
        _
      $region48: #{conv3d_block_forward.3} parent=43 // pred_fallthru
        _
    $region44: #{conv3d_block_forward.3} parent=5 // pred_fallthru
      _
    %p1007 = scmp.le.s32.totalorder 2, %s12
    // Predicated region
    $region49: #{conv3d_block_forward.3} parent=5 // pred_check
      %p1008 = pneg %p1007
    $region50: #{conv3d_block_forward.3} parent=5 // pred_check_branch
      %1010 = sbr.rel (%p1008) target = $region52
    $region51: #{conv3d_block_forward.3} parent=5 // pred_region
      %s1011 = ssub.s32 %s12, 2
      // Predicated region
      $region53: #{conv3d_block_forward.3} parent=51 // pred_check
        %p1012 = pneg %p212
      $region54: #{conv3d_block_forward.3} parent=51 // pred_check_branch
        %1014 = sbr.rel (%p1012) target = $region56
      $region55: #{conv3d_block_forward.3} parent=51 // pred_region
        %p1015 = scmp.lt.s32.totalorder %s23, 1
        %s1016 = scalar_select %p1015, %s23, 1
        %p1017 = scmp.lt.s32.totalorder %s24, 7
        %s1018 = scalar_select %p1017, %s24, 7
        %s1019 = smul.addr %s1016, 8
        %s1020 = sadd.s32 %s1018, %s1019
        %s1021 = smul.addr %s1020, 8
        %s1022 = scalar_lea.vmem %s6, %s1021
      $region56: #{conv3d_block_forward.3} parent=51 // pred_fallthru
        _
    $region52: #{conv3d_block_forward.3} parent=5 // pred_fallthru
      _
  $region6: #{conv3d_block_forward.3} parent=0 // loop_footer
    %s16 = sadd.s32 1, %s12
  $region7: #{conv3d_block_forward.3} parent=0 // loop_footer_branch
    %11 = sbr.rel target = $region3
  $region8: #{conv3d_block_forward.3} parent=0 // loop_exit
    _

</llo_original>
